<compile_context>
chip_gen: v7x
topology: tpu7x:2x2x1
jax: 0.10.0
libtpu: 0.0.40
codegen_flags: <defaults>
</compile_context>

<pallas_src>
import jax
import jax.numpy as jnp
from jax.experimental import pallas as pl
from jax.experimental.pallas import tpu as pltpu

LANE_PAD = 128     # padded feature width of intermediate activations / weights
NUM_LAYERS = 6


def autoencoder_kernel(x_ref, w_ref, b_ref, out_ref):
    """One batch tile: full 6-layer MLP on VMEM-resident blocks.

    x_ref   : (TILE_B, D_pad) bf16   input activations (D_pad = round_up(D,16))
    w_ref   : (6, 128, 128)   bf16   zero-padded weight slab, layer-major
    b_ref   : (6, 1, 128)     f32    zero-padded bias slab
    out_ref : (TILE_B, 128)   f32    lane-dense output (sliced to D outside)
    """
    d_pad = x_ref.shape[-1]          # static

    # Layer 0: contract only over the real (16-aligned) input rows of the slab.
    h = jnp.dot(x_ref[...], w_ref[0, :d_pad, :],
                preferred_element_type=jnp.float32) + b_ref[0]
    h = jnp.maximum(h, 0.0).astype(jnp.bfloat16)

    # Layers 1..4: Linear -> ReLU on the 128-lane padded activations.
    for layer in range(1, NUM_LAYERS - 1):
        h = jnp.dot(h, w_ref[layer],
                    preferred_element_type=jnp.float32) + b_ref[layer]
        h = jnp.maximum(h, 0.0).astype(jnp.bfloat16)

    # Final layer: Linear -> Sigmoid (exp + approx reciprocal both on the EUP).
    y = jnp.dot(h, w_ref[NUM_LAYERS - 1],
                preferred_element_type=jnp.float32) + b_ref[NUM_LAYERS - 1]
    out_ref[...] = pl.reciprocal(1.0 + jnp.exp(-y), approx=True).astype(out_ref.dtype)


def _round_up(n, m):
    return ((n + m - 1) // m) * m


def init_params(key, input_dim, latent_dim=16):
    """PyTorch-style uniform(-1/sqrt(fan_in), 1/sqrt(fan_in)) init.

    Weights stored pre-transposed as (in_features, out_features) so the kernel
    computes y = x @ W + b, matching PyTorch's y = x @ W_pt.T + b.
    """
    dims = [(input_dim, 64), (64, 32), (32, latent_dim),
            (latent_dim, 32), (32, 64), (64, input_dim)]
    params = []
    for (fan_in, fan_out) in dims:
        key, kw, kb = jax.random.split(key, 3)
        bound = 1.0 / jnp.sqrt(float(fan_in))
        w = jax.random.uniform(kw, (fan_in, fan_out), jnp.float32, -bound, bound)
        b = jax.random.uniform(kb, (fan_out,), jnp.float32, -bound, bound)
        params.append((w, b))
    return params


def pack_params(params):
    """Pack the 6 (W, b) pairs into zero-padded 128x128 slabs (layer-major).

    Weights are cast to bf16 for the MXU; biases stay f32 (added after the
    f32-accumulating matmul).
    """
    w_slab = jnp.zeros((NUM_LAYERS, LANE_PAD, LANE_PAD), jnp.float32)
    b_slab = jnp.zeros((NUM_LAYERS, 1, LANE_PAD), jnp.float32)
    for i, (w, b) in enumerate(params):
        fan_in, fan_out = w.shape
        w_slab = w_slab.at[i, :fan_in, :fan_out].set(w.astype(jnp.float32))
        b_slab = b_slab.at[i, 0, :fan_out].set(b.reshape(-1).astype(jnp.float32))
    return w_slab.astype(jnp.bfloat16), b_slab


def autoencoder_forward(x, params, *, tile_b=1024):
    """Run the autoencoder forward pass with a batch-tiled Pallas kernel."""
    B, D = x.shape
    assert D <= LANE_PAD, "feature dim must fit the 128-lane padded width"

    w_slab, b_slab = pack_params(params)

    # Minimal padding: features to a multiple of 16 (clean bf16 sublane tiles
    # for the layer-0 contraction), batch to a multiple of 16.
    D_pad = min(LANE_PAD, _round_up(D, 16))
    B_pad = _round_up(B, 16)

    # Batch tile: multiple of 16, capped so the parallel grid keeps >= 2 steps
    # (v7x dual TensorCore) whenever the batch allows it.
    tb = min(_round_up(tile_b, 16), _round_up(pl.cdiv(B_pad, 2), 16))
    tb = max(16, tb)
    grid = (pl.cdiv(B_pad, tb),)

    if (B_pad, D_pad) == (B, D):
        x_in = x.astype(jnp.bfloat16)
    else:
        x_in = jnp.zeros((B_pad, D_pad), jnp.bfloat16).at[:B, :D].set(
            x.astype(jnp.bfloat16))

    cost = pl.CostEstimate(
        flops=2 * B_pad * LANE_PAD * LANE_PAD * NUM_LAYERS,
        transcendentals=2 * B_pad * LANE_PAD,          # exp + reciprocal
        bytes_accessed=(x_in.size * 2 + B_pad * LANE_PAD * 4
                        + w_slab.size * 2 + b_slab.size * 4),
    )

    out_pad = pl.pallas_call(
        autoencoder_kernel,
        out_shape=jax.ShapeDtypeStruct((B_pad, LANE_PAD), jnp.float32),
        grid=grid,
        in_specs=[
            # Activation tile: streamed / double-buffered over the batch grid.
            pl.BlockSpec((tb, D_pad), lambda i: (i, 0)),
            # Weight & bias slabs: constant index_map -> DMA'd once, VMEM-resident.
            pl.BlockSpec((NUM_LAYERS, LANE_PAD, LANE_PAD), lambda i: (0, 0, 0)),
            pl.BlockSpec((NUM_LAYERS, 1, LANE_PAD), lambda i: (0, 0, 0)),
        ],
        # Output kept lane-dense at 128 (unmasked vst); sliced to D outside.
        out_specs=pl.BlockSpec((tb, LANE_PAD), lambda i: (i, 0)),
        compiler_params=pltpu.CompilerParams(
            dimension_semantics=("parallel",)),
        cost_estimate=cost,
    )(x_in, w_slab, b_slab)

    return out_pad[:B, :D]


def autoencoder_ref(x, params):
    """Pure-JAX f32 reference for correctness check."""
    h = x
    for i, (w, b) in enumerate(params):
        h = h @ w + b
        if i < NUM_LAYERS - 1:
            h = jnp.maximum(h, 0.0)
        else:
            h = jax.nn.sigmoid(h)
    return h


if __name__ == "__main__":
    # Shapes consistent with the module: input_dim = 6 scaled numerical features
    # + a handful of one-hot categorical columns; latent_dim = 16.
    batch = 512
    input_dim = 24
    latent_dim = 16

    key = jax.random.PRNGKey(0)
    key, kx = jax.random.split(key)
    x = jax.random.normal(kx, (batch, input_dim), dtype=jnp.float32)

    params = init_params(key, input_dim, latent_dim)

    out = autoencoder_forward(x, params, tile_b=1024)
    out = jax.block_until_ready(out)

    ref = autoencoder_ref(x, params)
    assert out.shape == (batch, input_dim)
    # Tolerance covers bf16 MXU inputs (f32 accumulation) and the EUP
    # approximate reciprocal in the final sigmoid.
    max_err = float(jnp.max(jnp.abs(out - ref)))
    assert jnp.allclose(out, ref, atol=2e-2, rtol=2e-2), f"mismatch vs ref: {max_err}"

    print("KERNEL_OK")
</pallas_src>

<mosaic_0001>
module attributes {stable_mosaic.version = 11 : i64} {
  func.func @autoencoder_kernel(%arg0: i32, %arg1: memref<256x32xbf16, #tpu.memory_space<vmem>>, %arg2: memref<6x128x128xbf16, #tpu.memory_space<vmem>>, %arg3: memref<6x1x128xf32, #tpu.memory_space<vmem>>, %arg4: memref<256x128xf32, #tpu.memory_space<vmem>>) attributes {dimension_semantics = [#tpu.dimension_semantics<parallel>], iteration_bounds = array<i64: 2>, scalar_prefetch = 0 : i64, scratch_operands = 0 : i64, tpu.core_type = #tpu.core_type<tc>, window_params = [{transform_indices = @transform_0, window_bounds = array<i64: 256, 32>}, {pipeline_mode = #tpu.pipeline_mode<synchronous>, transform_indices = @transform_1, window_bounds = array<i64: 6, 128, 128>}, {pipeline_mode = #tpu.pipeline_mode<synchronous>, transform_indices = @transform_2, window_bounds = array<i64: 6, 1, 128>}, {transform_indices = @transform_3, window_bounds = array<i64: 256, 128>}]} {
    %c0 = arith.constant 0 : index
    %c0_0 = arith.constant 0 : index
    %0 = vector.load %arg1[%c0, %c0_0] : memref<256x32xbf16, #tpu.memory_space<vmem>>, vector<256x32xbf16>
    %c0_1 = arith.constant 0 : index
    %c0_2 = arith.constant 0 : index
    %c0_3 = arith.constant 0 : index
    %1 = vector.load %arg2[%c0_1, %c0_2, %c0_3] : memref<6x128x128xbf16, #tpu.memory_space<vmem>>, vector<1x32x128xbf16>
    %2 = vector.shape_cast %1 : vector<1x32x128xbf16> to vector<32x128xbf16>
    %cst = arith.constant dense<0.000000e+00> : vector<256x128xf32>
    %3 = tpu.matmul %0, %2, %cst {dimension_numbers = #tpu.dot_dimension_numbers<[1], [0], [0], [1], [0, 0, 1, 1], [], []>} : vector<256x32xbf16>, vector<32x128xbf16>, vector<256x128xf32> -> vector<256x128xf32>
    %c0_4 = arith.constant 0 : index
    %c0_5 = arith.constant 0 : index
    %c0_6 = arith.constant 0 : index
    %4 = vector.load %arg3[%c0_4, %c0_5, %c0_6] : memref<6x1x128xf32, #tpu.memory_space<vmem>>, vector<1x1x128xf32>
    %5 = vector.shape_cast %4 : vector<1x1x128xf32> to vector<1x128xf32>
    %6 = vector.broadcast %5 : vector<1x128xf32> to vector<256x128xf32>
    %7 = arith.addf %3, %6 : vector<256x128xf32>
    %cst_7 = arith.constant 0.000000e+00 : f32
    %8 = vector.broadcast %cst_7 : f32 to vector<256x128xf32>
    %9 = arith.maximumf %7, %8 : vector<256x128xf32>
    %10 = arith.truncf %9 : vector<256x128xf32> to vector<256x128xbf16>
    %c1 = arith.constant 1 : index
    %c0_8 = arith.constant 0 : index
    %c0_9 = arith.constant 0 : index
    %11 = vector.load %arg2[%c1, %c0_8, %c0_9] : memref<6x128x128xbf16, #tpu.memory_space<vmem>>, vector<1x128x128xbf16>
    %12 = vector.shape_cast %11 : vector<1x128x128xbf16> to vector<128x128xbf16>
    %cst_10 = arith.constant dense<0.000000e+00> : vector<256x128xf32>
    %13 = tpu.matmul %10, %12, %cst_10 {dimension_numbers = #tpu.dot_dimension_numbers<[1], [0], [0], [1], [0, 0, 1, 1], [], []>} : vector<256x128xbf16>, vector<128x128xbf16>, vector<256x128xf32> -> vector<256x128xf32>
    %c1_11 = arith.constant 1 : index
    %c0_12 = arith.constant 0 : index
    %c0_13 = arith.constant 0 : index
    %14 = vector.load %arg3[%c1_11, %c0_12, %c0_13] : memref<6x1x128xf32, #tpu.memory_space<vmem>>, vector<1x1x128xf32>
    %15 = vector.shape_cast %14 : vector<1x1x128xf32> to vector<1x128xf32>
    %16 = vector.broadcast %15 : vector<1x128xf32> to vector<256x128xf32>
    %17 = arith.addf %13, %16 : vector<256x128xf32>
    %cst_14 = arith.constant 0.000000e+00 : f32
    %18 = vector.broadcast %cst_14 : f32 to vector<256x128xf32>
    %19 = arith.maximumf %17, %18 : vector<256x128xf32>
    %20 = arith.truncf %19 : vector<256x128xf32> to vector<256x128xbf16>
    %c2 = arith.constant 2 : index
    %c0_15 = arith.constant 0 : index
    %c0_16 = arith.constant 0 : index
    %21 = vector.load %arg2[%c2, %c0_15, %c0_16] : memref<6x128x128xbf16, #tpu.memory_space<vmem>>, vector<1x128x128xbf16>
    %22 = vector.shape_cast %21 : vector<1x128x128xbf16> to vector<128x128xbf16>
    %cst_17 = arith.constant dense<0.000000e+00> : vector<256x128xf32>
    %23 = tpu.matmul %20, %22, %cst_17 {dimension_numbers = #tpu.dot_dimension_numbers<[1], [0], [0], [1], [0, 0, 1, 1], [], []>} : vector<256x128xbf16>, vector<128x128xbf16>, vector<256x128xf32> -> vector<256x128xf32>
    %c2_18 = arith.constant 2 : index
    %c0_19 = arith.constant 0 : index
    %c0_20 = arith.constant 0 : index
    %24 = vector.load %arg3[%c2_18, %c0_19, %c0_20] : memref<6x1x128xf32, #tpu.memory_space<vmem>>, vector<1x1x128xf32>
    %25 = vector.shape_cast %24 : vector<1x1x128xf32> to vector<1x128xf32>
    %26 = vector.broadcast %25 : vector<1x128xf32> to vector<256x128xf32>
    %27 = arith.addf %23, %26 : vector<256x128xf32>
    %cst_21 = arith.constant 0.000000e+00 : f32
    %28 = vector.broadcast %cst_21 : f32 to vector<256x128xf32>
    %29 = arith.maximumf %27, %28 : vector<256x128xf32>
    %30 = arith.truncf %29 : vector<256x128xf32> to vector<256x128xbf16>
    %c3 = arith.constant 3 : index
    %c0_22 = arith.constant 0 : index
    %c0_23 = arith.constant 0 : index
    %31 = vector.load %arg2[%c3, %c0_22, %c0_23] : memref<6x128x128xbf16, #tpu.memory_space<vmem>>, vector<1x128x128xbf16>
    %32 = vector.shape_cast %31 : vector<1x128x128xbf16> to vector<128x128xbf16>
    %cst_24 = arith.constant dense<0.000000e+00> : vector<256x128xf32>
    %33 = tpu.matmul %30, %32, %cst_24 {dimension_numbers = #tpu.dot_dimension_numbers<[1], [0], [0], [1], [0, 0, 1, 1], [], []>} : vector<256x128xbf16>, vector<128x128xbf16>, vector<256x128xf32> -> vector<256x128xf32>
    %c3_25 = arith.constant 3 : index
    %c0_26 = arith.constant 0 : index
    %c0_27 = arith.constant 0 : index
    %34 = vector.load %arg3[%c3_25, %c0_26, %c0_27] : memref<6x1x128xf32, #tpu.memory_space<vmem>>, vector<1x1x128xf32>
    %35 = vector.shape_cast %34 : vector<1x1x128xf32> to vector<1x128xf32>
    %36 = vector.broadcast %35 : vector<1x128xf32> to vector<256x128xf32>
    %37 = arith.addf %33, %36 : vector<256x128xf32>
    %cst_28 = arith.constant 0.000000e+00 : f32
    %38 = vector.broadcast %cst_28 : f32 to vector<256x128xf32>
    %39 = arith.maximumf %37, %38 : vector<256x128xf32>
    %40 = arith.truncf %39 : vector<256x128xf32> to vector<256x128xbf16>
    %c4 = arith.constant 4 : index
    %c0_29 = arith.constant 0 : index
    %c0_30 = arith.constant 0 : index
    %41 = vector.load %arg2[%c4, %c0_29, %c0_30] : memref<6x128x128xbf16, #tpu.memory_space<vmem>>, vector<1x128x128xbf16>
    %42 = vector.shape_cast %41 : vector<1x128x128xbf16> to vector<128x128xbf16>
    %cst_31 = arith.constant dense<0.000000e+00> : vector<256x128xf32>
    %43 = tpu.matmul %40, %42, %cst_31 {dimension_numbers = #tpu.dot_dimension_numbers<[1], [0], [0], [1], [0, 0, 1, 1], [], []>} : vector<256x128xbf16>, vector<128x128xbf16>, vector<256x128xf32> -> vector<256x128xf32>
    %c4_32 = arith.constant 4 : index
    %c0_33 = arith.constant 0 : index
    %c0_34 = arith.constant 0 : index
    %44 = vector.load %arg3[%c4_32, %c0_33, %c0_34] : memref<6x1x128xf32, #tpu.memory_space<vmem>>, vector<1x1x128xf32>
    %45 = vector.shape_cast %44 : vector<1x1x128xf32> to vector<1x128xf32>
    %46 = vector.broadcast %45 : vector<1x128xf32> to vector<256x128xf32>
    %47 = arith.addf %43, %46 : vector<256x128xf32>
    %cst_35 = arith.constant 0.000000e+00 : f32
    %48 = vector.broadcast %cst_35 : f32 to vector<256x128xf32>
    %49 = arith.maximumf %47, %48 : vector<256x128xf32>
    %50 = arith.truncf %49 : vector<256x128xf32> to vector<256x128xbf16>
    %c5 = arith.constant 5 : index
    %c0_36 = arith.constant 0 : index
    %c0_37 = arith.constant 0 : index
    %51 = vector.load %arg2[%c5, %c0_36, %c0_37] : memref<6x128x128xbf16, #tpu.memory_space<vmem>>, vector<1x128x128xbf16>
    %52 = vector.shape_cast %51 : vector<1x128x128xbf16> to vector<128x128xbf16>
    %cst_38 = arith.constant dense<0.000000e+00> : vector<256x128xf32>
    %53 = tpu.matmul %50, %52, %cst_38 {dimension_numbers = #tpu.dot_dimension_numbers<[1], [0], [0], [1], [0, 0, 1, 1], [], []>} : vector<256x128xbf16>, vector<128x128xbf16>, vector<256x128xf32> -> vector<256x128xf32>
    %c5_39 = arith.constant 5 : index
    %c0_40 = arith.constant 0 : index
    %c0_41 = arith.constant 0 : index
    %54 = vector.load %arg3[%c5_39, %c0_40, %c0_41] : memref<6x1x128xf32, #tpu.memory_space<vmem>>, vector<1x1x128xf32>
    %55 = vector.shape_cast %54 : vector<1x1x128xf32> to vector<1x128xf32>
    %56 = vector.broadcast %55 : vector<1x128xf32> to vector<256x128xf32>
    %57 = arith.addf %53, %56 : vector<256x128xf32>
    %cst_42 = arith.constant 0.000000e+00 : f32
    %58 = vector.broadcast %cst_42 : f32 to vector<256x128xf32>
    %59 = arith.subf %58, %57 : vector<256x128xf32>
    %60 = math.exp %59 : vector<256x128xf32>
    %cst_43 = arith.constant 1.000000e+00 : f32
    %61 = vector.broadcast %cst_43 : f32 to vector<256x128xf32>
    %62 = arith.addf %61, %60 : vector<256x128xf32>
    %63 = tpu.reciprocal %62 {approx = true} : vector<256x128xf32> -> vector<256x128xf32>
    %c0_44 = arith.constant 0 : index
    %c0_45 = arith.constant 0 : index
    %64 = vector.load %arg4[%c0_44, %c0_45] : memref<256x128xf32, #tpu.memory_space<vmem>>, vector<256x128xf32>
    tpu.vector_store %arg4[%c0_44, %c0_45], %63 {strides = array<i32>} : memref<256x128xf32, #tpu.memory_space<vmem>>, vector<256x128xf32>,
    return
  }
  func.func @transform_0(%arg0: i32) -> (i32, i32) {
    %c0_i32 = arith.constant 0 : i32
    %c0_i32_0 = arith.constant 0 : i32
    return %arg0, %c0_i32 : i32, i32
  }
  func.func @transform_1(%arg0: i32) -> (i32, i32, i32) {
    %c0_i32 = arith.constant 0 : i32
    %c0_i32_0 = arith.constant 0 : i32
    %c0_i32_1 = arith.constant 0 : i32
    %c0_i32_2 = arith.constant 0 : i32
    return %c0_i32, %c0_i32_0, %c0_i32_1 : i32, i32, i32
  }
  func.func @transform_2(%arg0: i32) -> (i32, i32, i32) {
    %c0_i32 = arith.constant 0 : i32
    %c0_i32_0 = arith.constant 0 : i32
    %c0_i32_1 = arith.constant 0 : i32
    %c0_i32_2 = arith.constant 0 : i32
    return %c0_i32, %c0_i32_0, %c0_i32_1 : i32, i32, i32
  }
  func.func @transform_3(%arg0: i32) -> (i32, i32) {
    %c0_i32 = arith.constant 0 : i32
    %c0_i32_0 = arith.constant 0 : i32
    return %arg0, %c0_i32 : i32, i32
  }
}

</mosaic_0001>

<llo_original>
// kernel: tpu_custom_call.1
$region0: #{tpu_custom_call.1}
  #allocation0 [shape = 'u32[]', space=smem, size = 0x4, offset = 0x4, fixed_abs, tag = 'smem constant byte address 0x4 - core index']
  #allocation1 [shape = 'u32[144,128]{1,0:T(1,128)}', space=vmem, size = 0x12000, scoped, tag = 'internal scratch']
  %s0 = inlined_call_operand.vmem [shape: bf16[512,32], index: 0, kind: input, shape index: {}]
  %s1 = inlined_call_operand.hbm [shape: bf16[6,128,128], index: 1, kind: input, shape index: {}]
  %s2 = inlined_call_operand.vmem [shape: f32[6,1,128], index: 2, kind: input, shape index: {}]
  %s3 = inlined_call_operand.hbm [shape: f32[512,128], index: 3, kind: output, shape index: {}]
  %s4 = sld [smem:[#allocation0]]
  $region49: #{tpu_custom_call.1} parent=0
    _
  %s6 = ssub.s32 1, %s4
  %s7 = scalar_select 0, %s6, %s4
  $region1: #{tpu_custom_call.1} parent=0
    #allocation2 [shape = 'u8[196608]{0}', space=vmem, size = 0x30000, scoped, tag = 'input window, operand 1, single buffered']
    #allocation3 [shape = 's32[2]{0}', space=sflag, size = 0x8, scoped, tag = 'scoped memory for tpu_custom_call.1']
    #allocation4 [shape = 's32[2]{0}', space=sflag, size = 0x8, scoped, tag = 'scoped memory for tpu_custom_call.1']
    #allocation5 [shape = 'u8[262144]{0}', space=vmem, size = 0x40000, scoped, tag = 'output window, operand 0']
    %8 = vsyncpa [#allocation3], 0
    %9 = vsyncpa [#allocation4], 0
    %s10 = scalar_lea.sflag [#allocation4], 1
    %11 = vsyncpa %s10, 0
    loop: start=0, step=1, limit=4
    $region2: #{tpu_custom_call.1} parent=1 // loop_pre_header
      _
    $region3: #{tpu_custom_call.1} parent=1 // loop_header
      %s13 = sphi 0, %s17
      %p14 = scmp.ge.s32.totalorder %s13, 4
      %s23 = sphi 0, %s25
      %s26 = sphi 0, %s23
      %s27 = sphi 0, %s26
      %s43 = sphi 0, %s27
      %s47 = sphi 0, %s47
      %s49 = sphi 0, %s47
      %s50 = sphi 0, %s49
      %s64 = sphi 0, %s50
      %s68 = sphi 0, %s68
      %s70 = sphi 0, %s68
      %s71 = sphi 0, %s70
      %s85 = sphi 0, %s71
      %s91 = sphi 0, %s93
      %s94 = sphi 0, %s91
      %s95 = sphi 0, %s94
      %s111 = sphi 0, %s95
    $region4: #{tpu_custom_call.1} parent=1 // loop_header_branch
      %16 = sbr.rel (%p14) target = $region8
    $region5: #{tpu_custom_call.1} parent=1 // loop_body
      %s18 = ssub.s32 %s13, 1
      %s19 = ssub.s32 %s13, 2
      %s20 = sadd.s32 %s13, 1
      %s21 = ssub.s32 %s13, %s20
      %p22 = scmp.eq.s32.totalorder %s21, 0
      %s24 = sadd.s32 %s23, 1
      %s25 = scalar_select %p22, %s23, %s24
      %p28 = pneg %p22
      %p29 = scmp.eq.s32.totalorder %s13, 1
      %p30 = por %p28, %p29
      %p31 = scmp.ne.s32.totalorder %s23, %s26
      %p32 = scmp.eq.s32.totalorder %s13, 0
      %p33 = por %p31, %p32
      %p34 = scmp.ne.s32.totalorder %s23, %s26
      %p35 = scmp.eq.s32.totalorder %s18, 1
      %p36 = por %p34, %p35
      %p37 = scmp.ne.s32.totalorder %s26, %s27
      %p38 = scmp.eq.s32.totalorder %s18, 0
      %p39 = por %p37, %p38
      %p40 = scmp.ne.s32.totalorder %s26, %s27
      %p41 = scmp.eq.s32.totalorder %s19, 1
      %p42 = por %p40, %p41
      %p44 = scmp.ne.s32.totalorder %s27, %s43
      %p45 = scmp.eq.s32.totalorder %s19, 0
      %p46 = por %p44, %p45
      %s48 = sadd.s32 %s47, 1
      %p51 = scmp.eq.s32.totalorder %s13, 1
      %p52 = scmp.ne.s32.totalorder %s47, %s49
      %p53 = scmp.eq.s32.totalorder %s13, 0
      %p54 = por %p52, %p53
      %p55 = scmp.ne.s32.totalorder %s47, %s49
      %p56 = scmp.eq.s32.totalorder %s18, 1
      %p57 = por %p55, %p56
      %p58 = scmp.ne.s32.totalorder %s49, %s50
      %p59 = scmp.eq.s32.totalorder %s18, 0
      %p60 = por %p58, %p59
      %p61 = scmp.ne.s32.totalorder %s49, %s50
      %p62 = scmp.eq.s32.totalorder %s19, 1
      %p63 = por %p61, %p62
      %p65 = scmp.ne.s32.totalorder %s50, %s64
      %p66 = scmp.eq.s32.totalorder %s19, 0
      %p67 = por %p65, %p66
      %s69 = sadd.s32 %s68, 1
      %p72 = scmp.eq.s32.totalorder %s13, 1
      %p73 = scmp.ne.s32.totalorder %s68, %s70
      %p74 = scmp.eq.s32.totalorder %s13, 0
      %p75 = por %p73, %p74
      %p76 = scmp.ne.s32.totalorder %s68, %s70
      %p77 = scmp.eq.s32.totalorder %s18, 1
      %p78 = por %p76, %p77
      %p79 = scmp.ne.s32.totalorder %s70, %s71
      %p80 = scmp.eq.s32.totalorder %s18, 0
      %p81 = por %p79, %p80
      %p82 = scmp.ne.s32.totalorder %s70, %s71
      %p83 = scmp.eq.s32.totalorder %s19, 1
      %p84 = por %p82, %p83
      %p86 = scmp.ne.s32.totalorder %s71, %s85
      %p87 = scmp.eq.s32.totalorder %s19, 0
      %p88 = por %p86, %p87
      %s89 = ssub.s32 %s13, %s20
      %p90 = scmp.eq.s32.totalorder %s89, 0
      %s92 = sadd.s32 %s91, 1
      %s93 = scalar_select %p90, %s91, %s92
      %p96 = pneg %p90
      %p97 = scmp.eq.s32.totalorder %s13, 1
      %p98 = por %p96, %p97
      %p99 = scmp.ne.s32.totalorder %s91, %s94
      %p100 = scmp.eq.s32.totalorder %s13, 0
      %p101 = por %p99, %p100
      %p102 = scmp.ne.s32.totalorder %s91, %s94
      %p103 = scmp.eq.s32.totalorder %s18, 1
      %p104 = por %p102, %p103
      %p105 = scmp.ne.s32.totalorder %s94, %s95
      %p106 = scmp.eq.s32.totalorder %s18, 0
      %p107 = por %p105, %p106
      %p108 = scmp.ne.s32.totalorder %s94, %s95
      %p109 = scmp.eq.s32.totalorder %s19, 1
      %p110 = por %p108, %p109
      %p112 = scmp.ne.s32.totalorder %s95, %s111
      %p113 = scmp.eq.s32.totalorder %s19, 0
      %p114 = por %p112, %p113
      %p115 = scmp.le.s32.totalorder 1, %s13
      %p116 = scmp.lt.s32.totalorder %s13, 3
      %p117 = pnand %p115, %p116
      %p118 = pneg %p117
      // Predicated region
      $region9: #{tpu_custom_call.1} parent=5 // pred_check
        _
      $region10: #{tpu_custom_call.1} parent=5 // pred_check_branch
        %120 = sbr.rel (%p117) target = $region12
      $region11: #{tpu_custom_call.1} parent=5 // pred_region
        %s121 = ssub.s32 %s13, 1
        // Predicated region
        $region13: #{tpu_custom_call.1} parent=11 // pred_check
          %p122 = pneg %p60
        $region14: #{tpu_custom_call.1} parent=11 // pred_check_branch
          %124 = sbr.rel (%p122) target = $region16
        $region15: #{tpu_custom_call.1} parent=11 // pred_region
          %s126 = ssub.s32 6144, 6144
          %127 = vsyncadd [#allocation3], %s126
          %s128 = sshll.u32 [#allocation2], 4
          %s129 = int_to_ptr.vmem [resolvable:$true] %s128
          %134 = dma.hbm_to_vmem [thread:$0]  %s1, 6144, %s129, [#allocation3], 64, 64, 4
        $region16: #{tpu_custom_call.1} parent=11 // pred_fallthru
          _
        // Predicated region
        $region17: #{tpu_custom_call.1} parent=11 // pred_check
          %p135 = pneg %p81
        $region18: #{tpu_custom_call.1} parent=11 // pred_check_branch
          %137 = sbr.rel (%p135) target = $region20
        $region19: #{tpu_custom_call.1} parent=11 // pred_region
          _
        $region20: #{tpu_custom_call.1} parent=11 // pred_fallthru
          _
      $region12: #{tpu_custom_call.1} parent=5 // pred_fallthru
        _
      %p138 = scmp.lt.s32.totalorder %s13, 2
      // Predicated region
      $region21: #{tpu_custom_call.1} parent=5 // pred_check
        %p139 = pneg %p138
      $region22: #{tpu_custom_call.1} parent=5 // pred_check_branch
        %141 = sbr.rel (%p139) target = $region24
      $region23: #{tpu_custom_call.1} parent=5 // pred_region
        // Predicated region
        $region25: #{tpu_custom_call.1} parent=23 // pred_check
          %p142 = pneg %p33
        $region26: #{tpu_custom_call.1} parent=23 // pred_check_branch
          %144 = sbr.rel (%p142) target = $region28
        $region27: #{tpu_custom_call.1} parent=23 // pred_region
          %s145 = smul.u32 32, %s13
          %p146 = scmp.lt.s32.totalorder %s145, 63
          %s147 = scalar_select %p146, %s145, 63
          %s148 = smul.addr %s147, 4
          %s149 = scalar_lea.vmem %s0, %s148
          %s150 = smul.u32 32, %s13
        $region28: #{tpu_custom_call.1} parent=23 // pred_fallthru
          _
      $region24: #{tpu_custom_call.1} parent=5 // pred_fallthru
        _
      %p151 = scmp.le.s32.totalorder 1, %s13
      %p152 = scmp.lt.s32.totalorder %s13, 3
      %p153 = pnand %p151, %p152
      %p154 = pneg %p153
      // Predicated region
      $region29: #{tpu_custom_call.1} parent=5 // pred_check
        _
      $region30: #{tpu_custom_call.1} parent=5 // pred_check_branch
        %156 = sbr.rel (%p153) target = $region32
      $region31: #{tpu_custom_call.1} parent=5 // pred_region
        %s157 = ssub.s32 %s13, 1
        // Predicated region
        $region33: #{tpu_custom_call.1} parent=31 // pred_check
          %p158 = pneg %p60
        $region34: #{tpu_custom_call.1} parent=31 // pred_check_branch
          %160 = sbr.rel (%p158) target = $region36
        $region35: #{tpu_custom_call.1} parent=31 // pred_region
          %161 = dma.done [#allocation3], 6144
        $region36: #{tpu_custom_call.1} parent=31 // pred_fallthru
          _
        %s162 = smul.u32 32, %s18
        %p163 = scmp.lt.s32.totalorder %s162, 63
        %s164 = scalar_select %p163, %s162, 63
        %s165 = smul.addr %s164, 4
        %s166 = scalar_lea.vmem %s0, %s165
        %p167 = pneg %p39
        %p168 = pneg %p36
        %p169 = pneg %p60
        %p170 = pneg %p57
        %p171 = pneg %p81
        %p172 = pneg %p78
        %p173 = pneg %p107
        %p174 = pneg %p104
        %s175 = sand.u32 %s94, 1
        %s176 = scalar_lea.sflag [#allocation4], %s175
        %s177 = sand.u32 %s94, 1
        %s178 = smul.addr %s177, 256
        %s179 = scalar_lea.vmem [#allocation5], %s178
        %s180 = smul.u32 32, %s18
        %p181 = scmp.lt.s32.totalorder %s180, 63
        %s182 = scalar_select %p181, %s180, 63
        %s183 = smul.addr %s182, 4
        %s184 = scalar_lea.vmem %s0, %s183
        %s185 = smul.u32 32, %s18
        %s186 = smul.u32 32, %s18
        %v188 = vld [vmem:[%s184] sm:$0xf]
        %v189 = vld [vmem:[%s184 + $0x4] sm:$0xf]
        %v190 = vld [vmem:[%s184 + $0x8] sm:$0xf]
        %v191 = vld [vmem:[%s184 + $0xc] sm:$0xf]
        %v192 = vld [vmem:[%s184 + $0x10] sm:$0xf]
        %v193 = vld [vmem:[%s184 + $0x14] sm:$0xf]
        %v194 = vld [vmem:[%s184 + $0x18] sm:$0xf]
        %v195 = vld [vmem:[%s184 + $0x1c] sm:$0xf]
        %v196 = vld [vmem:[%s184 + $0x20] sm:$0xf]
        %v197 = vld [vmem:[%s184 + $0x24] sm:$0xf]
        %v198 = vld [vmem:[%s184 + $0x28] sm:$0xf]
        %v199 = vld [vmem:[%s184 + $0x2c] sm:$0xf]
        %v200 = vld [vmem:[%s184 + $0x30] sm:$0xf]
        %v201 = vld [vmem:[%s184 + $0x34] sm:$0xf]
        %v202 = vld [vmem:[%s184 + $0x38] sm:$0xf]
        %v203 = vld [vmem:[%s184 + $0x3c] sm:$0xf]
        %v204 = vld [vmem:[%s184 + $0x40] sm:$0xf]
        %v205 = vld [vmem:[%s184 + $0x44] sm:$0xf]
        %v206 = vld [vmem:[%s184 + $0x48] sm:$0xf]
        %v207 = vld [vmem:[%s184 + $0x4c] sm:$0xf]
        %v208 = vld [vmem:[%s184 + $0x50] sm:$0xf]
        %v209 = vld [vmem:[%s184 + $0x54] sm:$0xf]
        %v210 = vld [vmem:[%s184 + $0x58] sm:$0xf]
        %v211 = vld [vmem:[%s184 + $0x5c] sm:$0xf]
        %v212 = vld [vmem:[%s184 + $0x60] sm:$0xf]
        %v213 = vld [vmem:[%s184 + $0x64] sm:$0xf]
        %v214 = vld [vmem:[%s184 + $0x68] sm:$0xf]
        %v215 = vld [vmem:[%s184 + $0x6c] sm:$0xf]
        %v216 = vld [vmem:[%s184 + $0x70] sm:$0xf]
        %v217 = vld [vmem:[%s184 + $0x74] sm:$0xf]
        %v218 = vld [vmem:[%s184 + $0x78] sm:$0xf]
        %v219 = vld [vmem:[%s184 + $0x7c] sm:$0xf]
        %v220 = vld [vmem:[#allocation2] sm:$0xf]
        %v221 = vld [vmem:[#allocation2 + $0x4] sm:$0xf]
        %v222 = vld [vmem:[#allocation2 + $0x8] sm:$0xf]
        %v223 = vld [vmem:[#allocation2 + $0xc] sm:$0xf]
        %v224 = vld [vmem:[%s2] sm:$0x1]
        %v226 = vlaneseq
        %v227 = vshrl.u32 %v226, 7
        %v228 = vsub.s32 0, %v227
        %v229 = vrot.slane %v224, %v228
        %v263 = vunpack.c.l.b16 %v188
        %v264 = vunpack.c.l.b16 %v189
        %v265 = vunpack.c.l.b16 %v190
        %v266 = vunpack.c.l.b16 %v191
        %v267 = vunpack.c.l.b16 %v192
        %v268 = vunpack.c.l.b16 %v193
        %v269 = vunpack.c.l.b16 %v194
        %v270 = vunpack.c.l.b16 %v195
        %v271 = vunpack.c.l.b16 %v196
        %v272 = vunpack.c.l.b16 %v197
        %v273 = vunpack.c.l.b16 %v198
        %v274 = vunpack.c.l.b16 %v199
        %v275 = vunpack.c.l.b16 %v200
        %v276 = vunpack.c.l.b16 %v201
        %v277 = vunpack.c.l.b16 %v202
        %v278 = vunpack.c.l.b16 %v203
        %v279 = vunpack.c.l.b16 %v204
        %v280 = vunpack.c.l.b16 %v205
        %v281 = vunpack.c.l.b16 %v206
        %v282 = vunpack.c.l.b16 %v207
        %v283 = vunpack.c.l.b16 %v208
        %v284 = vunpack.c.l.b16 %v209
        %v285 = vunpack.c.l.b16 %v210
        %v286 = vunpack.c.l.b16 %v211
        %v287 = vunpack.c.l.b16 %v212
        %v288 = vunpack.c.l.b16 %v213
        %v289 = vunpack.c.l.b16 %v214
        %v290 = vunpack.c.l.b16 %v215
        %v291 = vunpack.c.l.b16 %v216
        %v292 = vunpack.c.l.b16 %v217
        %v293 = vunpack.c.l.b16 %v218
        %v294 = vunpack.c.l.b16 %v219
        %v295 = vpack.c.b16 %v264, %v263
        %v296 = vpack.c.b16 %v266, %v265
        %v297 = vpack.c.b16 %v268, %v267
        %v298 = vpack.c.b16 %v270, %v269
        %v299 = vpack.c.b16 %v272, %v271
        %v300 = vpack.c.b16 %v274, %v273
        %v301 = vpack.c.b16 %v276, %v275
        %v302 = vpack.c.b16 %v278, %v277
        %v303 = vpack.c.b16 %v280, %v279
        %v304 = vpack.c.b16 %v282, %v281
        %v305 = vpack.c.b16 %v284, %v283
        %v306 = vpack.c.b16 %v286, %v285
        %v307 = vpack.c.b16 %v288, %v287
        %v308 = vpack.c.b16 %v290, %v289
        %v309 = vpack.c.b16 %v292, %v291
        %v310 = vpack.c.b16 %v294, %v293
        %v315 = vunpack.c.l.b16 %v220
        %v316 = vunpack.c.l.b16 %v221
        %v317 = vunpack.c.l.b16 %v222
        %v318 = vunpack.c.l.b16 %v223
        %v319 = vpack.c.b16 %v316, %v315
        %v320 = vpack.c.b16 %v318, %v317
        %vm323 = vcmask 261120
        %v325 = vsel %vm323, %v295, 0
        %v328 = vsel %vm323, %v296, 0
        %v331 = vsel %vm323, %v297, 0
        %v334 = vsel %vm323, %v298, 0
        %v337 = vsel %vm323, %v299, 0
        %v340 = vsel %vm323, %v300, 0
        %v343 = vsel %vm323, %v301, 0
        %v346 = vsel %vm323, %v302, 0
        %v349 = vsel %vm323, %v303, 0
        %v352 = vsel %vm323, %v304, 0
        %v355 = vsel %vm323, %v305, 0
        %v358 = vsel %vm323, %v306, 0
        %v361 = vsel %vm323, %v307, 0
        %v364 = vsel %vm323, %v308, 0
        %v367 = vsel %vm323, %v309, 0
        %v370 = vsel %vm323, %v310, 0
        %372 = vmatprep.subr.bf16.mxu0 0
        %373 = vmatpush1.bf16.msra.mxu0 %v319
        %374 = vmatprep.subr.bf16.mxu0 0
        %375 = vmatpush1.bf16.msra.mxu0 %v320
        %376 = vmatprep.subr.bf16.mxu0 0
        %377 = vmatpush1.bf16.msra.mxu0 0
        %378 = vmatprep.subr.bf16.mxu0 0
        %379 = vmatpush1.bf16.msra.mxu0 0
        %380 = vmatprep.subr.bf16.mxu0 0
        %381 = vmatpush1.bf16.msra.mxu0 0
        %382 = vmatprep.subr.bf16.mxu0 0
        %383 = vmatpush1.bf16.msra.mxu0 0
        %384 = vmatprep.subr.bf16.mxu0 0
        %385 = vmatpush1.bf16.msra.mxu0 0
        %386 = vmatprep.subr.bf16.mxu0 0
        %387 = vmatpush1.bf16.msra.mxu0 0
        %388 = vmatprep.subr.bf16.mxu0 0
        %389 = vmatpush1.bf16.msra.mxu0 0
        %390 = vmatprep.subr.bf16.mxu0 0
        %391 = vmatpush1.bf16.msra.mxu0 0
        %392 = vmatprep.subr.bf16.mxu0 0
        %393 = vmatpush1.bf16.msra.mxu0 0
        %394 = vmatprep.subr.bf16.mxu0 0
        %395 = vmatpush1.bf16.msra.mxu0 0
        %396 = vmatprep.subr.bf16.mxu0 0
        %397 = vmatpush1.bf16.msra.mxu0 0
        %398 = vmatprep.subr.bf16.mxu0 0
        %399 = vmatpush1.bf16.msra.mxu0 0
        %400 = vmatprep.subr.bf16.mxu0 0
        %401 = vmatpush1.bf16.msra.mxu0 0
        %402 = vmatprep.subr.bf16.mxu0 0
        %403 = vmatpush1.bf16.msra.mxu0 0
        %404 = vmatprep.mubr.bf16.mxu0 0
        %405 = vmatmul.mubr.bf16.gmra.mrb[0].mxu0 %v325
        %v406 = vpop.f32.mrb[0].mxu0
        %v407 = vadd.f32 %v229, %v406
        %v408 = vpop.f32.mrb[0].mxu0
        %v409 = vpop.f32.mrb[0].mxu0
        %v410 = vadd.f32 %v229, %v409
        %v411 = vpop.f32.mrb[0].mxu0
        %412 = vmatprep.mubr.bf16.mxu0 0
        %413 = vmatmul.mubr.bf16.gmra.mrb[0].mxu0 %v328
        %v414 = vpop.f32.mrb[0].mxu0
        %v415 = vadd.f32 %v229, %v414
        %v416 = vpop.f32.mrb[0].mxu0
        %v417 = vpop.f32.mrb[0].mxu0
        %v418 = vadd.f32 %v229, %v417
        %v419 = vpop.f32.mrb[0].mxu0
        %420 = vmatprep.mubr.bf16.mxu0 0
        %421 = vmatmul.mubr.bf16.gmra.mrb[0].mxu0 %v331
        %v422 = vpop.f32.mrb[0].mxu0
        %v423 = vadd.f32 %v229, %v422
        %v424 = vpop.f32.mrb[0].mxu0
        %v425 = vpop.f32.mrb[0].mxu0
        %v426 = vadd.f32 %v229, %v425
        %v427 = vpop.f32.mrb[0].mxu0
        %428 = vmatprep.mubr.bf16.mxu0 0
        %429 = vmatmul.mubr.bf16.gmra.mrb[0].mxu0 %v334
        %v430 = vpop.f32.mrb[0].mxu0
        %v431 = vadd.f32 %v229, %v430
        %v432 = vpop.f32.mrb[0].mxu0
        %v433 = vpop.f32.mrb[0].mxu0
        %v434 = vadd.f32 %v229, %v433
        %v435 = vpop.f32.mrb[0].mxu0
        %436 = vmatprep.mubr.bf16.mxu0 0
        %437 = vmatmul.mubr.bf16.gmra.mrb[0].mxu0 %v337
        %v438 = vpop.f32.mrb[0].mxu0
        %v439 = vadd.f32 %v229, %v438
        %v440 = vpop.f32.mrb[0].mxu0
        %v441 = vpop.f32.mrb[0].mxu0
        %v442 = vadd.f32 %v229, %v441
        %v443 = vpop.f32.mrb[0].mxu0
        %444 = vmatprep.mubr.bf16.mxu0 0
        %445 = vmatmul.mubr.bf16.gmra.mrb[0].mxu0 %v340
        %v446 = vpop.f32.mrb[0].mxu0
        %v447 = vadd.f32 %v229, %v446
        %v448 = vpop.f32.mrb[0].mxu0
        %v449 = vpop.f32.mrb[0].mxu0
        %v450 = vadd.f32 %v229, %v449
        %v451 = vpop.f32.mrb[0].mxu0
        %452 = vmatprep.mubr.bf16.mxu0 0
        %453 = vmatmul.mubr.bf16.gmra.mrb[0].mxu0 %v343
        %v454 = vpop.f32.mrb[0].mxu0
        %v455 = vadd.f32 %v229, %v454
        %v456 = vpop.f32.mrb[0].mxu0
        %v457 = vpop.f32.mrb[0].mxu0
        %v458 = vadd.f32 %v229, %v457
        %v459 = vpop.f32.mrb[0].mxu0
        %460 = vmatprep.mubr.bf16.mxu0 0
        %461 = vmatmul.mubr.bf16.gmra.mrb[0].mxu0 %v346
        %v462 = vpop.f32.mrb[0].mxu0
        %v463 = vadd.f32 %v229, %v462
        %v464 = vpop.f32.mrb[0].mxu0
        %v465 = vpop.f32.mrb[0].mxu0
        %v466 = vadd.f32 %v229, %v465
        %v467 = vpop.f32.mrb[0].mxu0
        %468 = vmatprep.mubr.bf16.mxu0 0
        %469 = vmatmul.mubr.bf16.gmra.mrb[0].mxu0 %v349
        %v470 = vpop.f32.mrb[0].mxu0
        %v471 = vadd.f32 %v229, %v470
        %v472 = vpop.f32.mrb[0].mxu0
        %v473 = vpop.f32.mrb[0].mxu0
        %v474 = vadd.f32 %v229, %v473
        %v475 = vpop.f32.mrb[0].mxu0
        %476 = vmatprep.mubr.bf16.mxu0 0
        %477 = vmatmul.mubr.bf16.gmra.mrb[0].mxu0 %v352
        %v478 = vpop.f32.mrb[0].mxu0
        %v479 = vadd.f32 %v229, %v478
        %v480 = vpop.f32.mrb[0].mxu0
        %v481 = vpop.f32.mrb[0].mxu0
        %v482 = vadd.f32 %v229, %v481
        %v483 = vpop.f32.mrb[0].mxu0
        %484 = vmatprep.mubr.bf16.mxu0 0
        %485 = vmatmul.mubr.bf16.gmra.mrb[0].mxu0 %v355
        %v486 = vpop.f32.mrb[0].mxu0
        %v487 = vadd.f32 %v229, %v486
        %v488 = vpop.f32.mrb[0].mxu0
        %v489 = vpop.f32.mrb[0].mxu0
        %v490 = vadd.f32 %v229, %v489
        %v491 = vpop.f32.mrb[0].mxu0
        %492 = vmatprep.mubr.bf16.mxu0 0
        %493 = vmatmul.mubr.bf16.gmra.mrb[0].mxu0 %v358
        %v494 = vpop.f32.mrb[0].mxu0
        %v495 = vadd.f32 %v229, %v494
        %v496 = vpop.f32.mrb[0].mxu0
        %v497 = vpop.f32.mrb[0].mxu0
        %v498 = vadd.f32 %v229, %v497
        %v499 = vpop.f32.mrb[0].mxu0
        %500 = vmatprep.mubr.bf16.mxu0 0
        %501 = vmatmul.mubr.bf16.gmra.mrb[0].mxu0 %v361
        %v502 = vpop.f32.mrb[0].mxu0
        %v503 = vadd.f32 %v229, %v502
        %v504 = vpop.f32.mrb[0].mxu0
        %v505 = vpop.f32.mrb[0].mxu0
        %v506 = vadd.f32 %v229, %v505
        %v507 = vpop.f32.mrb[0].mxu0
        %508 = vmatprep.mubr.bf16.mxu0 0
        %509 = vmatmul.mubr.bf16.gmra.mrb[0].mxu0 %v364
        %v510 = vpop.f32.mrb[0].mxu0
        %v511 = vadd.f32 %v229, %v510
        %v512 = vpop.f32.mrb[0].mxu0
        %v513 = vpop.f32.mrb[0].mxu0
        %v514 = vadd.f32 %v229, %v513
        %v515 = vpop.f32.mrb[0].mxu0
        %516 = vmatprep.mubr.bf16.mxu0 0
        %517 = vmatmul.mubr.bf16.gmra.mrb[0].mxu0 %v367
        %v518 = vpop.f32.mrb[0].mxu0
        %v519 = vadd.f32 %v229, %v518
        %v520 = vpop.f32.mrb[0].mxu0
        %v521 = vpop.f32.mrb[0].mxu0
        %v522 = vadd.f32 %v229, %v521
        %v523 = vpop.f32.mrb[0].mxu0
        %524 = vmatprep.mubr.bf16.mxu0 0
        %525 = vmatmul.mubr.bf16.gmra.mrb[0].mxu0 %v370
        %v526 = vpop.f32.mrb[0].mxu0
        %v527 = vadd.f32 %v229, %v526
        %v528 = vpop.f32.mrb[0].mxu0
        %v529 = vpop.f32.mrb[0].mxu0
        %v530 = vadd.f32 %v229, %v529
        %v531 = vpop.f32.mrb[0].mxu0
        %532 = vdwg.mxu0
        %v533 = vmax.f32 %v407, 0.0
        %v534 = vmax.f32 %v410, 0.0
        %v535 = vmax.f32 %v415, 0.0
        %v536 = vmax.f32 %v418, 0.0
        %v537 = vmax.f32 %v423, 0.0
        %v538 = vmax.f32 %v426, 0.0
        %v539 = vmax.f32 %v431, 0.0
        %v540 = vmax.f32 %v434, 0.0
        %v541 = vmax.f32 %v439, 0.0
        %v542 = vmax.f32 %v442, 0.0
        %v543 = vmax.f32 %v447, 0.0
        %v544 = vmax.f32 %v450, 0.0
        %v545 = vmax.f32 %v455, 0.0
        %v546 = vmax.f32 %v458, 0.0
        %v547 = vmax.f32 %v463, 0.0
        %v548 = vmax.f32 %v466, 0.0
        %v549 = vmax.f32 %v471, 0.0
        %v550 = vmax.f32 %v474, 0.0
        %v551 = vmax.f32 %v479, 0.0
        %v552 = vmax.f32 %v482, 0.0
        %v553 = vmax.f32 %v487, 0.0
        %v554 = vmax.f32 %v490, 0.0
        %v555 = vmax.f32 %v495, 0.0
        %v556 = vmax.f32 %v498, 0.0
        %v557 = vmax.f32 %v503, 0.0
        %v558 = vmax.f32 %v506, 0.0
        %v559 = vmax.f32 %v511, 0.0
        %v560 = vmax.f32 %v514, 0.0
        %v561 = vmax.f32 %v519, 0.0
        %v562 = vmax.f32 %v522, 0.0
        %v563 = vmax.f32 %v527, 0.0
        %v564 = vmax.f32 %v530, 0.0
        %v565 = vpack.c.bf16 %v534, %v533
        %v566 = vpack.c.bf16 %v536, %v535
        %v567 = vpack.c.bf16 %v538, %v537
        %v568 = vpack.c.bf16 %v540, %v539
        %v569 = vpack.c.bf16 %v542, %v541
        %v570 = vpack.c.bf16 %v544, %v543
        %v571 = vpack.c.bf16 %v546, %v545
        %v572 = vpack.c.bf16 %v548, %v547
        %v573 = vpack.c.bf16 %v550, %v549
        %v574 = vpack.c.bf16 %v552, %v551
        %v575 = vpack.c.bf16 %v554, %v553
        %v576 = vpack.c.bf16 %v556, %v555
        %v577 = vpack.c.bf16 %v558, %v557
        %v578 = vpack.c.bf16 %v560, %v559
        %v579 = vpack.c.bf16 %v562, %v561
        %v580 = vpack.c.bf16 %v564, %v563
        %s581 = scalar_lea.vmem [#allocation2], 64
        %v582 = vld [vmem:[%s581] sm:$0xf]
        %v583 = vld [vmem:[%s581 + $0x4] sm:$0xf]
        %v584 = vld [vmem:[%s581 + $0x8] sm:$0xf]
        %v585 = vld [vmem:[%s581 + $0xc] sm:$0xf]
        %v586 = vld [vmem:[%s581 + $0x10] sm:$0xf]
        %v587 = vld [vmem:[%s581 + $0x14] sm:$0xf]
        %v588 = vld [vmem:[%s581 + $0x18] sm:$0xf]
        %v589 = vld [vmem:[%s581 + $0x1c] sm:$0xf]
        %v590 = vld [vmem:[%s581 + $0x20] sm:$0xf]
        %v591 = vld [vmem:[%s581 + $0x24] sm:$0xf]
        %v592 = vld [vmem:[%s581 + $0x28] sm:$0xf]
        %v593 = vld [vmem:[%s581 + $0x2c] sm:$0xf]
        %v594 = vld [vmem:[%s581 + $0x30] sm:$0xf]
        %v595 = vld [vmem:[%s581 + $0x34] sm:$0xf]
        %v596 = vld [vmem:[%s581 + $0x38] sm:$0xf]
        %v597 = vld [vmem:[%s581 + $0x3c] sm:$0xf]
        %s598 = scalar_lea.vmem %s2, 1
        %v599 = vld [vmem:[%s598] sm:$0x1]
        %v601 = vlaneseq
        %v602 = vshrl.u32 %v601, 7
        %v603 = vsub.s32 0, %v602
        %v604 = vrot.slane %v599, %v603
        %v622 = vunpack.c.l.b16 %v582
        %v623 = vunpack.c.l.b16 %v583
        %v624 = vunpack.c.l.b16 %v584
        %v625 = vunpack.c.l.b16 %v585
        %v626 = vunpack.c.l.b16 %v586
        %v627 = vunpack.c.l.b16 %v587
        %v628 = vunpack.c.l.b16 %v588
        %v629 = vunpack.c.l.b16 %v589
        %v630 = vunpack.c.l.b16 %v590
        %v631 = vunpack.c.l.b16 %v591
        %v632 = vunpack.c.l.b16 %v592
        %v633 = vunpack.c.l.b16 %v593
        %v634 = vunpack.c.l.b16 %v594
        %v635 = vunpack.c.l.b16 %v595
        %v636 = vunpack.c.l.b16 %v596
        %v637 = vunpack.c.l.b16 %v597
        %v638 = vpack.c.b16 %v623, %v622
        %v639 = vpack.c.b16 %v625, %v624
        %v640 = vpack.c.b16 %v627, %v626
        %v641 = vpack.c.b16 %v629, %v628
        %v642 = vpack.c.b16 %v631, %v630
        %v643 = vpack.c.b16 %v633, %v632
        %v644 = vpack.c.b16 %v635, %v634
        %v645 = vpack.c.b16 %v637, %v636
        %654 = vmatprep.subr.bf16.mxu0 0
        %655 = vmatpush1.bf16.msra.mxu0 %v638
        %656 = vmatprep.subr.bf16.mxu0 0
        %657 = vmatpush1.bf16.msra.mxu0 %v639
        %658 = vmatprep.subr.bf16.mxu0 0
        %659 = vmatpush1.bf16.msra.mxu0 %v640
        %660 = vmatprep.subr.bf16.mxu0 0
        %661 = vmatpush1.bf16.msra.mxu0 %v641
        %662 = vmatprep.subr.bf16.mxu0 0
        %663 = vmatpush1.bf16.msra.mxu0 %v642
        %664 = vmatprep.subr.bf16.mxu0 0
        %665 = vmatpush1.bf16.msra.mxu0 %v643
        %666 = vmatprep.subr.bf16.mxu0 0
        %667 = vmatpush1.bf16.msra.mxu0 %v644
        %668 = vmatprep.subr.bf16.mxu0 0
        %669 = vmatpush1.bf16.msra.mxu0 %v645
        %670 = vmatprep.subr.bf16.mxu0 0
        %671 = vmatpush1.bf16.msra.mxu0 0
        %672 = vmatprep.subr.bf16.mxu0 0
        %673 = vmatpush1.bf16.msra.mxu0 0
        %674 = vmatprep.subr.bf16.mxu0 0
        %675 = vmatpush1.bf16.msra.mxu0 0
        %676 = vmatprep.subr.bf16.mxu0 0
        %677 = vmatpush1.bf16.msra.mxu0 0
        %678 = vmatprep.subr.bf16.mxu0 0
        %679 = vmatpush1.bf16.msra.mxu0 0
        %680 = vmatprep.subr.bf16.mxu0 0
        %681 = vmatpush1.bf16.msra.mxu0 0
        %682 = vmatprep.subr.bf16.mxu0 0
        %683 = vmatpush1.bf16.msra.mxu0 0
        %684 = vmatprep.subr.bf16.mxu0 0
        %685 = vmatpush1.bf16.msra.mxu0 0
        %686 = vmatprep.mubr.bf16.mxu0 0
        %687 = vmatmul.mubr.bf16.gmra.mrb[0].mxu0 %v565
        %v688 = vpop.f32.mrb[0].mxu0
        %v689 = vadd.f32 %v604, %v688
        %v690 = vpop.f32.mrb[0].mxu0
        %v691 = vpop.f32.mrb[0].mxu0
        %v692 = vadd.f32 %v604, %v691
        %v693 = vpop.f32.mrb[0].mxu0
        %694 = vmatprep.mubr.bf16.mxu0 0
        %695 = vmatmul.mubr.bf16.gmra.mrb[0].mxu0 %v566
        %v696 = vpop.f32.mrb[0].mxu0
        %v697 = vadd.f32 %v604, %v696
        %v698 = vpop.f32.mrb[0].mxu0
        %v699 = vpop.f32.mrb[0].mxu0
        %v700 = vadd.f32 %v604, %v699
        %v701 = vpop.f32.mrb[0].mxu0
        %702 = vmatprep.mubr.bf16.mxu0 0
        %703 = vmatmul.mubr.bf16.gmra.mrb[0].mxu0 %v567
        %v704 = vpop.f32.mrb[0].mxu0
        %v705 = vadd.f32 %v604, %v704
        %v706 = vpop.f32.mrb[0].mxu0
        %v707 = vpop.f32.mrb[0].mxu0
        %v708 = vadd.f32 %v604, %v707
        %v709 = vpop.f32.mrb[0].mxu0
        %710 = vmatprep.mubr.bf16.mxu0 0
        %711 = vmatmul.mubr.bf16.gmra.mrb[0].mxu0 %v568
        %v712 = vpop.f32.mrb[0].mxu0
        %v713 = vadd.f32 %v604, %v712
        %v714 = vpop.f32.mrb[0].mxu0
        %v715 = vpop.f32.mrb[0].mxu0
        %v716 = vadd.f32 %v604, %v715
        %v717 = vpop.f32.mrb[0].mxu0
        %718 = vmatprep.mubr.bf16.mxu0 0
        %719 = vmatmul.mubr.bf16.gmra.mrb[0].mxu0 %v569
        %v720 = vpop.f32.mrb[0].mxu0
        %v721 = vadd.f32 %v604, %v720
        %v722 = vpop.f32.mrb[0].mxu0
        %v723 = vpop.f32.mrb[0].mxu0
        %v724 = vadd.f32 %v604, %v723
        %v725 = vpop.f32.mrb[0].mxu0
        %726 = vmatprep.mubr.bf16.mxu0 0
        %727 = vmatmul.mubr.bf16.gmra.mrb[0].mxu0 %v570
        %v728 = vpop.f32.mrb[0].mxu0
        %v729 = vadd.f32 %v604, %v728
        %v730 = vpop.f32.mrb[0].mxu0
        %v731 = vpop.f32.mrb[0].mxu0
        %v732 = vadd.f32 %v604, %v731
        %v733 = vpop.f32.mrb[0].mxu0
        %734 = vmatprep.mubr.bf16.mxu0 0
        %735 = vmatmul.mubr.bf16.gmra.mrb[0].mxu0 %v571
        %v736 = vpop.f32.mrb[0].mxu0
        %v737 = vadd.f32 %v604, %v736
        %v738 = vpop.f32.mrb[0].mxu0
        %v739 = vpop.f32.mrb[0].mxu0
        %v740 = vadd.f32 %v604, %v739
        %v741 = vpop.f32.mrb[0].mxu0
        %742 = vmatprep.mubr.bf16.mxu0 0
        %743 = vmatmul.mubr.bf16.gmra.mrb[0].mxu0 %v572
        %v744 = vpop.f32.mrb[0].mxu0
        %v745 = vadd.f32 %v604, %v744
        %v746 = vpop.f32.mrb[0].mxu0
        %v747 = vpop.f32.mrb[0].mxu0
        %v748 = vadd.f32 %v604, %v747
        %v749 = vpop.f32.mrb[0].mxu0
        %750 = vmatprep.mubr.bf16.mxu0 0
        %751 = vmatmul.mubr.bf16.gmra.mrb[0].mxu0 %v573
        %v752 = vpop.f32.mrb[0].mxu0
        %v753 = vadd.f32 %v604, %v752
        %v754 = vpop.f32.mrb[0].mxu0
        %v755 = vpop.f32.mrb[0].mxu0
        %v756 = vadd.f32 %v604, %v755
        %v757 = vpop.f32.mrb[0].mxu0
        %758 = vmatprep.mubr.bf16.mxu0 0
        %759 = vmatmul.mubr.bf16.gmra.mrb[0].mxu0 %v574
        %v760 = vpop.f32.mrb[0].mxu0
        %v761 = vadd.f32 %v604, %v760
        %v762 = vpop.f32.mrb[0].mxu0
        %v763 = vpop.f32.mrb[0].mxu0
        %v764 = vadd.f32 %v604, %v763
        %v765 = vpop.f32.mrb[0].mxu0
        %766 = vmatprep.mubr.bf16.mxu0 0
        %767 = vmatmul.mubr.bf16.gmra.mrb[0].mxu0 %v575
        %v768 = vpop.f32.mrb[0].mxu0
        %v769 = vadd.f32 %v604, %v768
        %v770 = vpop.f32.mrb[0].mxu0
        %v771 = vpop.f32.mrb[0].mxu0
        %v772 = vadd.f32 %v604, %v771
        %v773 = vpop.f32.mrb[0].mxu0
        %774 = vmatprep.mubr.bf16.mxu0 0
        %775 = vmatmul.mubr.bf16.gmra.mrb[0].mxu0 %v576
        %v776 = vpop.f32.mrb[0].mxu0
        %v777 = vadd.f32 %v604, %v776
        %v778 = vpop.f32.mrb[0].mxu0
        %v779 = vpop.f32.mrb[0].mxu0
        %v780 = vadd.f32 %v604, %v779
        %v781 = vpop.f32.mrb[0].mxu0
        %782 = vmatprep.mubr.bf16.mxu0 0
        %783 = vmatmul.mubr.bf16.gmra.mrb[0].mxu0 %v577
        %v784 = vpop.f32.mrb[0].mxu0
        %v785 = vadd.f32 %v604, %v784
        %v786 = vpop.f32.mrb[0].mxu0
        %v787 = vpop.f32.mrb[0].mxu0
        %v788 = vadd.f32 %v604, %v787
        %v789 = vpop.f32.mrb[0].mxu0
        %790 = vmatprep.mubr.bf16.mxu0 0
        %791 = vmatmul.mubr.bf16.gmra.mrb[0].mxu0 %v578
        %v792 = vpop.f32.mrb[0].mxu0
        %v793 = vadd.f32 %v604, %v792
        %v794 = vpop.f32.mrb[0].mxu0
        %v795 = vpop.f32.mrb[0].mxu0
        %v796 = vadd.f32 %v604, %v795
        %v797 = vpop.f32.mrb[0].mxu0
        %798 = vmatprep.mubr.bf16.mxu0 0
        %799 = vmatmul.mubr.bf16.gmra.mrb[0].mxu0 %v579
        %v800 = vpop.f32.mrb[0].mxu0
        %v801 = vadd.f32 %v604, %v800
        %v802 = vpop.f32.mrb[0].mxu0
        %v803 = vpop.f32.mrb[0].mxu0
        %v804 = vadd.f32 %v604, %v803
        %v805 = vpop.f32.mrb[0].mxu0
        %806 = vmatprep.mubr.bf16.mxu0 0
        %807 = vmatmul.mubr.bf16.gmra.mrb[0].mxu0 %v580
        %v808 = vpop.f32.mrb[0].mxu0
        %v809 = vadd.f32 %v604, %v808
        %v810 = vpop.f32.mrb[0].mxu0
        %v811 = vpop.f32.mrb[0].mxu0
        %v812 = vadd.f32 %v604, %v811
        %v813 = vpop.f32.mrb[0].mxu0
        %814 = vdwg.mxu0
        %v815 = vmax.f32 %v689, 0.0
        %v816 = vmax.f32 %v692, 0.0
        %v817 = vmax.f32 %v697, 0.0
        %v818 = vmax.f32 %v700, 0.0
        %v819 = vmax.f32 %v705, 0.0
        %v820 = vmax.f32 %v708, 0.0
        %v821 = vmax.f32 %v713, 0.0
        %v822 = vmax.f32 %v716, 0.0
        %v823 = vmax.f32 %v721, 0.0
        %v824 = vmax.f32 %v724, 0.0
        %v825 = vmax.f32 %v729, 0.0
        %v826 = vmax.f32 %v732, 0.0
        %v827 = vmax.f32 %v737, 0.0
        %v828 = vmax.f32 %v740, 0.0
        %v829 = vmax.f32 %v745, 0.0
        %v830 = vmax.f32 %v748, 0.0
        %v831 = vmax.f32 %v753, 0.0
        %v832 = vmax.f32 %v756, 0.0
        %v833 = vmax.f32 %v761, 0.0
        %v834 = vmax.f32 %v764, 0.0
        %v835 = vmax.f32 %v769, 0.0
        %v836 = vmax.f32 %v772, 0.0
        %v837 = vmax.f32 %v777, 0.0
        %v838 = vmax.f32 %v780, 0.0
        %v839 = vmax.f32 %v785, 0.0
        %v840 = vmax.f32 %v788, 0.0
        %v841 = vmax.f32 %v793, 0.0
        %v842 = vmax.f32 %v796, 0.0
        %v843 = vmax.f32 %v801, 0.0
        %v844 = vmax.f32 %v804, 0.0
        %v845 = vmax.f32 %v809, 0.0
        %v846 = vmax.f32 %v812, 0.0
        %v847 = vpack.c.bf16 %v816, %v815
        %v848 = vpack.c.bf16 %v818, %v817
        %v849 = vpack.c.bf16 %v820, %v819
        %v850 = vpack.c.bf16 %v822, %v821
        %v851 = vpack.c.bf16 %v824, %v823
        %v852 = vpack.c.bf16 %v826, %v825
        %v853 = vpack.c.bf16 %v828, %v827
        %v854 = vpack.c.bf16 %v830, %v829
        %v855 = vpack.c.bf16 %v832, %v831
        %v856 = vpack.c.bf16 %v834, %v833
        %v857 = vpack.c.bf16 %v836, %v835
        %v858 = vpack.c.bf16 %v838, %v837
        %v859 = vpack.c.bf16 %v840, %v839
        %v860 = vpack.c.bf16 %v842, %v841
        %v861 = vpack.c.bf16 %v844, %v843
        %v862 = vpack.c.bf16 %v846, %v845
        %s863 = scalar_lea.vmem [#allocation2], 128
        %v864 = vld [vmem:[%s863] sm:$0xf]
        %v865 = vld [vmem:[%s863 + $0x4] sm:$0xf]
        %v866 = vld [vmem:[%s863 + $0x8] sm:$0xf]
        %v867 = vld [vmem:[%s863 + $0xc] sm:$0xf]
        %v868 = vld [vmem:[%s863 + $0x10] sm:$0xf]
        %v869 = vld [vmem:[%s863 + $0x14] sm:$0xf]
        %v870 = vld [vmem:[%s863 + $0x18] sm:$0xf]
        %v871 = vld [vmem:[%s863 + $0x1c] sm:$0xf]
        %v872 = vld [vmem:[%s863 + $0x20] sm:$0xf]
        %v873 = vld [vmem:[%s863 + $0x24] sm:$0xf]
        %v874 = vld [vmem:[%s863 + $0x28] sm:$0xf]
        %v875 = vld [vmem:[%s863 + $0x2c] sm:$0xf]
        %v876 = vld [vmem:[%s863 + $0x30] sm:$0xf]
        %v877 = vld [vmem:[%s863 + $0x34] sm:$0xf]
        %v878 = vld [vmem:[%s863 + $0x38] sm:$0xf]
        %v879 = vld [vmem:[%s863 + $0x3c] sm:$0xf]
        %s880 = scalar_lea.vmem %s2, 2
        %v881 = vld [vmem:[%s880] sm:$0x1]
        %v883 = vlaneseq
        %v884 = vshrl.u32 %v883, 7
        %v885 = vsub.s32 0, %v884
        %v886 = vrot.slane %v881, %v885
        %v904 = vunpack.c.l.b16 %v864
        %v905 = vunpack.c.l.b16 %v865
        %v906 = vunpack.c.l.b16 %v866
        %v907 = vunpack.c.l.b16 %v867
        %v908 = vunpack.c.l.b16 %v868
        %v909 = vunpack.c.l.b16 %v869
        %v910 = vunpack.c.l.b16 %v870
        %v911 = vunpack.c.l.b16 %v871
        %v912 = vunpack.c.l.b16 %v872
        %v913 = vunpack.c.l.b16 %v873
        %v914 = vunpack.c.l.b16 %v874
        %v915 = vunpack.c.l.b16 %v875
        %v916 = vunpack.c.l.b16 %v876
        %v917 = vunpack.c.l.b16 %v877
        %v918 = vunpack.c.l.b16 %v878
        %v919 = vunpack.c.l.b16 %v879
        %v920 = vpack.c.b16 %v905, %v904
        %v921 = vpack.c.b16 %v907, %v906
        %v922 = vpack.c.b16 %v909, %v908
        %v923 = vpack.c.b16 %v911, %v910
        %v924 = vpack.c.b16 %v913, %v912
        %v925 = vpack.c.b16 %v915, %v914
        %v926 = vpack.c.b16 %v917, %v916
        %v927 = vpack.c.b16 %v919, %v918
        %936 = vmatprep.subr.bf16.mxu0 0
        %937 = vmatpush1.bf16.msra.mxu0 %v920
        %938 = vmatprep.subr.bf16.mxu0 0
        %939 = vmatpush1.bf16.msra.mxu0 %v921
        %940 = vmatprep.subr.bf16.mxu0 0
        %941 = vmatpush1.bf16.msra.mxu0 %v922
        %942 = vmatprep.subr.bf16.mxu0 0
        %943 = vmatpush1.bf16.msra.mxu0 %v923
        %944 = vmatprep.subr.bf16.mxu0 0
        %945 = vmatpush1.bf16.msra.mxu0 %v924
        %946 = vmatprep.subr.bf16.mxu0 0
        %947 = vmatpush1.bf16.msra.mxu0 %v925
        %948 = vmatprep.subr.bf16.mxu0 0
        %949 = vmatpush1.bf16.msra.mxu0 %v926
        %950 = vmatprep.subr.bf16.mxu0 0
        %951 = vmatpush1.bf16.msra.mxu0 %v927
        %952 = vmatprep.subr.bf16.mxu0 0
        %953 = vmatpush1.bf16.msra.mxu0 0
        %954 = vmatprep.subr.bf16.mxu0 0
        %955 = vmatpush1.bf16.msra.mxu0 0
        %956 = vmatprep.subr.bf16.mxu0 0
        %957 = vmatpush1.bf16.msra.mxu0 0
        %958 = vmatprep.subr.bf16.mxu0 0
        %959 = vmatpush1.bf16.msra.mxu0 0
        %960 = vmatprep.subr.bf16.mxu0 0
        %961 = vmatpush1.bf16.msra.mxu0 0
        %962 = vmatprep.subr.bf16.mxu0 0
        %963 = vmatpush1.bf16.msra.mxu0 0
        %964 = vmatprep.subr.bf16.mxu0 0
        %965 = vmatpush1.bf16.msra.mxu0 0
        %966 = vmatprep.subr.bf16.mxu0 0
        %967 = vmatpush1.bf16.msra.mxu0 0
        %968 = vmatprep.mubr.bf16.mxu0 0
        %969 = vmatmul.mubr.bf16.gmra.mrb[0].mxu0 %v847
        %v970 = vpop.f32.mrb[0].mxu0
        %v971 = vadd.f32 %v886, %v970
        %v972 = vpop.f32.mrb[0].mxu0
        %v973 = vpop.f32.mrb[0].mxu0
        %v974 = vadd.f32 %v886, %v973
        %v975 = vpop.f32.mrb[0].mxu0
        %976 = vmatprep.mubr.bf16.mxu0 0
        %977 = vmatmul.mubr.bf16.gmra.mrb[0].mxu0 %v848
        %v978 = vpop.f32.mrb[0].mxu0
        %v979 = vadd.f32 %v886, %v978
        %v980 = vpop.f32.mrb[0].mxu0
        %v981 = vpop.f32.mrb[0].mxu0
        %v982 = vadd.f32 %v886, %v981
        %v983 = vpop.f32.mrb[0].mxu0
        %984 = vmatprep.mubr.bf16.mxu0 0
        %985 = vmatmul.mubr.bf16.gmra.mrb[0].mxu0 %v849
        %v986 = vpop.f32.mrb[0].mxu0
        %v987 = vadd.f32 %v886, %v986
        %v988 = vpop.f32.mrb[0].mxu0
        %v989 = vpop.f32.mrb[0].mxu0
        %v990 = vadd.f32 %v886, %v989
        %v991 = vpop.f32.mrb[0].mxu0
        %992 = vmatprep.mubr.bf16.mxu0 0
        %993 = vmatmul.mubr.bf16.gmra.mrb[0].mxu0 %v850
        %v994 = vpop.f32.mrb[0].mxu0
        %v995 = vadd.f32 %v886, %v994
        %v996 = vpop.f32.mrb[0].mxu0
        %v997 = vpop.f32.mrb[0].mxu0
        %v998 = vadd.f32 %v886, %v997
        %v999 = vpop.f32.mrb[0].mxu0
        %1000 = vmatprep.mubr.bf16.mxu0 0
        %1001 = vmatmul.mubr.bf16.gmra.mrb[0].mxu0 %v851
        %v1002 = vpop.f32.mrb[0].mxu0
        %v1003 = vadd.f32 %v886, %v1002
        %v1004 = vpop.f32.mrb[0].mxu0
        %v1005 = vpop.f32.mrb[0].mxu0
        %v1006 = vadd.f32 %v886, %v1005
        %v1007 = vpop.f32.mrb[0].mxu0
        %1008 = vmatprep.mubr.bf16.mxu0 0
        %1009 = vmatmul.mubr.bf16.gmra.mrb[0].mxu0 %v852
        %v1010 = vpop.f32.mrb[0].mxu0
        %v1011 = vadd.f32 %v886, %v1010
        %v1012 = vpop.f32.mrb[0].mxu0
        %v1013 = vpop.f32.mrb[0].mxu0
        %v1014 = vadd.f32 %v886, %v1013
        %v1015 = vpop.f32.mrb[0].mxu0
        %1016 = vmatprep.mubr.bf16.mxu0 0
        %1017 = vmatmul.mubr.bf16.gmra.mrb[0].mxu0 %v853
        %v1018 = vpop.f32.mrb[0].mxu0
        %v1019 = vadd.f32 %v886, %v1018
        %v1020 = vpop.f32.mrb[0].mxu0
        %v1021 = vpop.f32.mrb[0].mxu0
        %v1022 = vadd.f32 %v886, %v1021
        %v1023 = vpop.f32.mrb[0].mxu0
        %1024 = vmatprep.mubr.bf16.mxu0 0
        %1025 = vmatmul.mubr.bf16.gmra.mrb[0].mxu0 %v854
        %v1026 = vpop.f32.mrb[0].mxu0
        %v1027 = vadd.f32 %v886, %v1026
        %v1028 = vpop.f32.mrb[0].mxu0
        %v1029 = vpop.f32.mrb[0].mxu0
        %v1030 = vadd.f32 %v886, %v1029
        %v1031 = vpop.f32.mrb[0].mxu0
        %1032 = vmatprep.mubr.bf16.mxu0 0
        %1033 = vmatmul.mubr.bf16.gmra.mrb[0].mxu0 %v855
        %v1034 = vpop.f32.mrb[0].mxu0
        %v1035 = vadd.f32 %v886, %v1034
        %v1036 = vpop.f32.mrb[0].mxu0
        %v1037 = vpop.f32.mrb[0].mxu0
        %v1038 = vadd.f32 %v886, %v1037
        %v1039 = vpop.f32.mrb[0].mxu0
        %1040 = vmatprep.mubr.bf16.mxu0 0
        %1041 = vmatmul.mubr.bf16.gmra.mrb[0].mxu0 %v856
        %v1042 = vpop.f32.mrb[0].mxu0
        %v1043 = vadd.f32 %v886, %v1042
        %v1044 = vpop.f32.mrb[0].mxu0
        %v1045 = vpop.f32.mrb[0].mxu0
        %v1046 = vadd.f32 %v886, %v1045
        %v1047 = vpop.f32.mrb[0].mxu0
        %1048 = vmatprep.mubr.bf16.mxu0 0
        %1049 = vmatmul.mubr.bf16.gmra.mrb[0].mxu0 %v857
        %v1050 = vpop.f32.mrb[0].mxu0
        %v1051 = vadd.f32 %v886, %v1050
        %v1052 = vpop.f32.mrb[0].mxu0
        %v1053 = vpop.f32.mrb[0].mxu0
        %v1054 = vadd.f32 %v886, %v1053
        %v1055 = vpop.f32.mrb[0].mxu0
        %1056 = vmatprep.mubr.bf16.mxu0 0
        %1057 = vmatmul.mubr.bf16.gmra.mrb[0].mxu0 %v858
        %v1058 = vpop.f32.mrb[0].mxu0
        %v1059 = vadd.f32 %v886, %v1058
        %v1060 = vpop.f32.mrb[0].mxu0
        %v1061 = vpop.f32.mrb[0].mxu0
        %v1062 = vadd.f32 %v886, %v1061
        %v1063 = vpop.f32.mrb[0].mxu0
        %1064 = vmatprep.mubr.bf16.mxu0 0
        %1065 = vmatmul.mubr.bf16.gmra.mrb[0].mxu0 %v859
        %v1066 = vpop.f32.mrb[0].mxu0
        %v1067 = vadd.f32 %v886, %v1066
        %v1068 = vpop.f32.mrb[0].mxu0
        %v1069 = vpop.f32.mrb[0].mxu0
        %v1070 = vadd.f32 %v886, %v1069
        %v1071 = vpop.f32.mrb[0].mxu0
        %1072 = vmatprep.mubr.bf16.mxu0 0
        %1073 = vmatmul.mubr.bf16.gmra.mrb[0].mxu0 %v860
        %v1074 = vpop.f32.mrb[0].mxu0
        %v1075 = vadd.f32 %v886, %v1074
        %v1076 = vpop.f32.mrb[0].mxu0
        %v1077 = vpop.f32.mrb[0].mxu0
        %v1078 = vadd.f32 %v886, %v1077
        %v1079 = vpop.f32.mrb[0].mxu0
        %1080 = vmatprep.mubr.bf16.mxu0 0
        %1081 = vmatmul.mubr.bf16.gmra.mrb[0].mxu0 %v861
        %v1082 = vpop.f32.mrb[0].mxu0
        %v1083 = vadd.f32 %v886, %v1082
        %v1084 = vpop.f32.mrb[0].mxu0
        %v1085 = vpop.f32.mrb[0].mxu0
        %v1086 = vadd.f32 %v886, %v1085
        %v1087 = vpop.f32.mrb[0].mxu0
        %1088 = vmatprep.mubr.bf16.mxu0 0
        %1089 = vmatmul.mubr.bf16.gmra.mrb[0].mxu0 %v862
        %v1090 = vpop.f32.mrb[0].mxu0
        %v1091 = vadd.f32 %v886, %v1090
        %v1092 = vpop.f32.mrb[0].mxu0
        %v1093 = vpop.f32.mrb[0].mxu0
        %v1094 = vadd.f32 %v886, %v1093
        %v1095 = vpop.f32.mrb[0].mxu0
        %1096 = vdwg.mxu0
        %v1097 = vmax.f32 %v971, 0.0
        %v1098 = vmax.f32 %v974, 0.0
        %v1099 = vmax.f32 %v979, 0.0
        %v1100 = vmax.f32 %v982, 0.0
        %v1101 = vmax.f32 %v987, 0.0
        %v1102 = vmax.f32 %v990, 0.0
        %v1103 = vmax.f32 %v995, 0.0
        %v1104 = vmax.f32 %v998, 0.0
        %v1105 = vmax.f32 %v1003, 0.0
        %v1106 = vmax.f32 %v1006, 0.0
        %v1107 = vmax.f32 %v1011, 0.0
        %v1108 = vmax.f32 %v1014, 0.0
        %v1109 = vmax.f32 %v1019, 0.0
        %v1110 = vmax.f32 %v1022, 0.0
        %v1111 = vmax.f32 %v1027, 0.0
        %v1112 = vmax.f32 %v1030, 0.0
        %v1113 = vmax.f32 %v1035, 0.0
        %v1114 = vmax.f32 %v1038, 0.0
        %v1115 = vmax.f32 %v1043, 0.0
        %v1116 = vmax.f32 %v1046, 0.0
        %v1117 = vmax.f32 %v1051, 0.0
        %v1118 = vmax.f32 %v1054, 0.0
        %v1119 = vmax.f32 %v1059, 0.0
        %v1120 = vmax.f32 %v1062, 0.0
        %v1121 = vmax.f32 %v1067, 0.0
        %v1122 = vmax.f32 %v1070, 0.0
        %v1123 = vmax.f32 %v1075, 0.0
        %v1124 = vmax.f32 %v1078, 0.0
        %v1125 = vmax.f32 %v1083, 0.0
        %v1126 = vmax.f32 %v1086, 0.0
        %v1127 = vmax.f32 %v1091, 0.0
        %v1128 = vmax.f32 %v1094, 0.0
        %v1129 = vpack.c.bf16 %v1098, %v1097
        %v1130 = vpack.c.bf16 %v1100, %v1099
        %v1131 = vpack.c.bf16 %v1102, %v1101
        %v1132 = vpack.c.bf16 %v1104, %v1103
        %v1133 = vpack.c.bf16 %v1106, %v1105
        %v1134 = vpack.c.bf16 %v1108, %v1107
        %v1135 = vpack.c.bf16 %v1110, %v1109
        %v1136 = vpack.c.bf16 %v1112, %v1111
        %v1137 = vpack.c.bf16 %v1114, %v1113
        %v1138 = vpack.c.bf16 %v1116, %v1115
        %v1139 = vpack.c.bf16 %v1118, %v1117
        %v1140 = vpack.c.bf16 %v1120, %v1119
        %v1141 = vpack.c.bf16 %v1122, %v1121
        %v1142 = vpack.c.bf16 %v1124, %v1123
        %v1143 = vpack.c.bf16 %v1126, %v1125
        %v1144 = vpack.c.bf16 %v1128, %v1127
        %s1145 = scalar_lea.vmem [#allocation2], 192
        %v1146 = vld [vmem:[%s1145] sm:$0xf]
        %v1147 = vld [vmem:[%s1145 + $0x4] sm:$0xf]
        %v1148 = vld [vmem:[%s1145 + $0x8] sm:$0xf]
        %v1149 = vld [vmem:[%s1145 + $0xc] sm:$0xf]
        %v1150 = vld [vmem:[%s1145 + $0x10] sm:$0xf]
        %v1151 = vld [vmem:[%s1145 + $0x14] sm:$0xf]
        %v1152 = vld [vmem:[%s1145 + $0x18] sm:$0xf]
        %v1153 = vld [vmem:[%s1145 + $0x1c] sm:$0xf]
        %v1154 = vld [vmem:[%s1145 + $0x20] sm:$0xf]
        %v1155 = vld [vmem:[%s1145 + $0x24] sm:$0xf]
        %v1156 = vld [vmem:[%s1145 + $0x28] sm:$0xf]
        %v1157 = vld [vmem:[%s1145 + $0x2c] sm:$0xf]
        %v1158 = vld [vmem:[%s1145 + $0x30] sm:$0xf]
        %v1159 = vld [vmem:[%s1145 + $0x34] sm:$0xf]
        %v1160 = vld [vmem:[%s1145 + $0x38] sm:$0xf]
        %v1161 = vld [vmem:[%s1145 + $0x3c] sm:$0xf]
        %s1162 = scalar_lea.vmem %s2, 3
        %v1163 = vld [vmem:[%s1162] sm:$0x1]
        %v1165 = vlaneseq
        %v1166 = vshrl.u32 %v1165, 7
        %v1167 = vsub.s32 0, %v1166
        %v1168 = vrot.slane %v1163, %v1167
        %v1186 = vunpack.c.l.b16 %v1146
        %v1187 = vunpack.c.l.b16 %v1147
        %v1188 = vunpack.c.l.b16 %v1148
        %v1189 = vunpack.c.l.b16 %v1149
        %v1190 = vunpack.c.l.b16 %v1150
        %v1191 = vunpack.c.l.b16 %v1151
        %v1192 = vunpack.c.l.b16 %v1152
        %v1193 = vunpack.c.l.b16 %v1153
        %v1194 = vunpack.c.l.b16 %v1154
        %v1195 = vunpack.c.l.b16 %v1155
        %v1196 = vunpack.c.l.b16 %v1156
        %v1197 = vunpack.c.l.b16 %v1157
        %v1198 = vunpack.c.l.b16 %v1158
        %v1199 = vunpack.c.l.b16 %v1159
        %v1200 = vunpack.c.l.b16 %v1160
        %v1201 = vunpack.c.l.b16 %v1161
        %v1202 = vpack.c.b16 %v1187, %v1186
        %v1203 = vpack.c.b16 %v1189, %v1188
        %v1204 = vpack.c.b16 %v1191, %v1190
        %v1205 = vpack.c.b16 %v1193, %v1192
        %v1206 = vpack.c.b16 %v1195, %v1194
        %v1207 = vpack.c.b16 %v1197, %v1196
        %v1208 = vpack.c.b16 %v1199, %v1198
        %v1209 = vpack.c.b16 %v1201, %v1200
        %1218 = vmatprep.subr.bf16.mxu0 0
        %1219 = vmatpush1.bf16.msra.mxu0 %v1202
        %1220 = vmatprep.subr.bf16.mxu0 0
        %1221 = vmatpush1.bf16.msra.mxu0 %v1203
        %1222 = vmatprep.subr.bf16.mxu0 0
        %1223 = vmatpush1.bf16.msra.mxu0 %v1204
        %1224 = vmatprep.subr.bf16.mxu0 0
        %1225 = vmatpush1.bf16.msra.mxu0 %v1205
        %1226 = vmatprep.subr.bf16.mxu0 0
        %1227 = vmatpush1.bf16.msra.mxu0 %v1206
        %1228 = vmatprep.subr.bf16.mxu0 0
        %1229 = vmatpush1.bf16.msra.mxu0 %v1207
        %1230 = vmatprep.subr.bf16.mxu0 0
        %1231 = vmatpush1.bf16.msra.mxu0 %v1208
        %1232 = vmatprep.subr.bf16.mxu0 0
        %1233 = vmatpush1.bf16.msra.mxu0 %v1209
        %1234 = vmatprep.subr.bf16.mxu0 0
        %1235 = vmatpush1.bf16.msra.mxu0 0
        %1236 = vmatprep.subr.bf16.mxu0 0
        %1237 = vmatpush1.bf16.msra.mxu0 0
        %1238 = vmatprep.subr.bf16.mxu0 0
        %1239 = vmatpush1.bf16.msra.mxu0 0
        %1240 = vmatprep.subr.bf16.mxu0 0
        %1241 = vmatpush1.bf16.msra.mxu0 0
        %1242 = vmatprep.subr.bf16.mxu0 0
        %1243 = vmatpush1.bf16.msra.mxu0 0
        %1244 = vmatprep.subr.bf16.mxu0 0
        %1245 = vmatpush1.bf16.msra.mxu0 0
        %1246 = vmatprep.subr.bf16.mxu0 0
        %1247 = vmatpush1.bf16.msra.mxu0 0
        %1248 = vmatprep.subr.bf16.mxu0 0
        %1249 = vmatpush1.bf16.msra.mxu0 0
        %1250 = vmatprep.mubr.bf16.mxu0 0
        %1251 = vmatmul.mubr.bf16.gmra.mrb[0].mxu0 %v1129
        %v1252 = vpop.f32.mrb[0].mxu0
        %v1253 = vadd.f32 %v1168, %v1252
        %v1254 = vpop.f32.mrb[0].mxu0
        %v1255 = vpop.f32.mrb[0].mxu0
        %v1256 = vadd.f32 %v1168, %v1255
        %v1257 = vpop.f32.mrb[0].mxu0
        %1258 = vmatprep.mubr.bf16.mxu0 0
        %1259 = vmatmul.mubr.bf16.gmra.mrb[0].mxu0 %v1130
        %v1260 = vpop.f32.mrb[0].mxu0
        %v1261 = vadd.f32 %v1168, %v1260
        %v1262 = vpop.f32.mrb[0].mxu0
        %v1263 = vpop.f32.mrb[0].mxu0
        %v1264 = vadd.f32 %v1168, %v1263
        %v1265 = vpop.f32.mrb[0].mxu0
        %1266 = vmatprep.mubr.bf16.mxu0 0
        %1267 = vmatmul.mubr.bf16.gmra.mrb[0].mxu0 %v1131
        %v1268 = vpop.f32.mrb[0].mxu0
        %v1269 = vadd.f32 %v1168, %v1268
        %v1270 = vpop.f32.mrb[0].mxu0
        %v1271 = vpop.f32.mrb[0].mxu0
        %v1272 = vadd.f32 %v1168, %v1271
        %v1273 = vpop.f32.mrb[0].mxu0
        %1274 = vmatprep.mubr.bf16.mxu0 0
        %1275 = vmatmul.mubr.bf16.gmra.mrb[0].mxu0 %v1132
        %v1276 = vpop.f32.mrb[0].mxu0
        %v1277 = vadd.f32 %v1168, %v1276
        %v1278 = vpop.f32.mrb[0].mxu0
        %v1279 = vpop.f32.mrb[0].mxu0
        %v1280 = vadd.f32 %v1168, %v1279
        %v1281 = vpop.f32.mrb[0].mxu0
        %1282 = vmatprep.mubr.bf16.mxu0 0
        %1283 = vmatmul.mubr.bf16.gmra.mrb[0].mxu0 %v1133
        %v1284 = vpop.f32.mrb[0].mxu0
        %v1285 = vadd.f32 %v1168, %v1284
        %v1286 = vpop.f32.mrb[0].mxu0
        %v1287 = vpop.f32.mrb[0].mxu0
        %v1288 = vadd.f32 %v1168, %v1287
        %v1289 = vpop.f32.mrb[0].mxu0
        %1290 = vmatprep.mubr.bf16.mxu0 0
        %1291 = vmatmul.mubr.bf16.gmra.mrb[0].mxu0 %v1134
        %v1292 = vpop.f32.mrb[0].mxu0
        %v1293 = vadd.f32 %v1168, %v1292
        %v1294 = vpop.f32.mrb[0].mxu0
        %v1295 = vpop.f32.mrb[0].mxu0
        %v1296 = vadd.f32 %v1168, %v1295
        %v1297 = vpop.f32.mrb[0].mxu0
        %1298 = vmatprep.mubr.bf16.mxu0 0
        %1299 = vmatmul.mubr.bf16.gmra.mrb[0].mxu0 %v1135
        %v1300 = vpop.f32.mrb[0].mxu0
        %v1301 = vadd.f32 %v1168, %v1300
        %v1302 = vpop.f32.mrb[0].mxu0
        %v1303 = vpop.f32.mrb[0].mxu0
        %v1304 = vadd.f32 %v1168, %v1303
        %v1305 = vpop.f32.mrb[0].mxu0
        %1306 = vmatprep.mubr.bf16.mxu0 0
        %1307 = vmatmul.mubr.bf16.gmra.mrb[0].mxu0 %v1136
        %v1308 = vpop.f32.mrb[0].mxu0
        %v1309 = vadd.f32 %v1168, %v1308
        %v1310 = vpop.f32.mrb[0].mxu0
        %v1311 = vpop.f32.mrb[0].mxu0
        %v1312 = vadd.f32 %v1168, %v1311
        %v1313 = vpop.f32.mrb[0].mxu0
        %1314 = vmatprep.mubr.bf16.mxu0 0
        %1315 = vmatmul.mubr.bf16.gmra.mrb[0].mxu0 %v1137
        %v1316 = vpop.f32.mrb[0].mxu0
        %v1317 = vadd.f32 %v1168, %v1316
        %v1318 = vpop.f32.mrb[0].mxu0
        %v1319 = vpop.f32.mrb[0].mxu0
        %v1320 = vadd.f32 %v1168, %v1319
        %v1321 = vpop.f32.mrb[0].mxu0
        %1322 = vmatprep.mubr.bf16.mxu0 0
        %1323 = vmatmul.mubr.bf16.gmra.mrb[0].mxu0 %v1138
        %v1324 = vpop.f32.mrb[0].mxu0
        %v1325 = vadd.f32 %v1168, %v1324
        %v1326 = vpop.f32.mrb[0].mxu0
        %v1327 = vpop.f32.mrb[0].mxu0
        %v1328 = vadd.f32 %v1168, %v1327
        %v1329 = vpop.f32.mrb[0].mxu0
        %1330 = vmatprep.mubr.bf16.mxu0 0
        %1331 = vmatmul.mubr.bf16.gmra.mrb[0].mxu0 %v1139
        %v1332 = vpop.f32.mrb[0].mxu0
        %v1333 = vadd.f32 %v1168, %v1332
        %v1334 = vpop.f32.mrb[0].mxu0
        %v1335 = vpop.f32.mrb[0].mxu0
        %v1336 = vadd.f32 %v1168, %v1335
        %v1337 = vpop.f32.mrb[0].mxu0
        %1338 = vmatprep.mubr.bf16.mxu0 0
        %1339 = vmatmul.mubr.bf16.gmra.mrb[0].mxu0 %v1140
        %v1340 = vpop.f32.mrb[0].mxu0
        %v1341 = vadd.f32 %v1168, %v1340
        %v1342 = vpop.f32.mrb[0].mxu0
        %v1343 = vpop.f32.mrb[0].mxu0
        %v1344 = vadd.f32 %v1168, %v1343
        %v1345 = vpop.f32.mrb[0].mxu0
        %1346 = vmatprep.mubr.bf16.mxu0 0
        %1347 = vmatmul.mubr.bf16.gmra.mrb[0].mxu0 %v1141
        %v1348 = vpop.f32.mrb[0].mxu0
        %v1349 = vadd.f32 %v1168, %v1348
        %v1350 = vpop.f32.mrb[0].mxu0
        %v1351 = vpop.f32.mrb[0].mxu0
        %v1352 = vadd.f32 %v1168, %v1351
        %v1353 = vpop.f32.mrb[0].mxu0
        %1354 = vmatprep.mubr.bf16.mxu0 0
        %1355 = vmatmul.mubr.bf16.gmra.mrb[0].mxu0 %v1142
        %v1356 = vpop.f32.mrb[0].mxu0
        %v1357 = vadd.f32 %v1168, %v1356
        %v1358 = vpop.f32.mrb[0].mxu0
        %v1359 = vpop.f32.mrb[0].mxu0
        %v1360 = vadd.f32 %v1168, %v1359
        %v1361 = vpop.f32.mrb[0].mxu0
        %1362 = vmatprep.mubr.bf16.mxu0 0
        %1363 = vmatmul.mubr.bf16.gmra.mrb[0].mxu0 %v1143
        %v1364 = vpop.f32.mrb[0].mxu0
        %v1365 = vadd.f32 %v1168, %v1364
        %v1366 = vpop.f32.mrb[0].mxu0
        %v1367 = vpop.f32.mrb[0].mxu0
        %v1368 = vadd.f32 %v1168, %v1367
        %v1369 = vpop.f32.mrb[0].mxu0
        %1370 = vmatprep.mubr.bf16.mxu0 0
        %1371 = vmatmul.mubr.bf16.gmra.mrb[0].mxu0 %v1144
        %v1372 = vpop.f32.mrb[0].mxu0
        %v1373 = vadd.f32 %v1168, %v1372
        %v1374 = vpop.f32.mrb[0].mxu0
        %v1375 = vpop.f32.mrb[0].mxu0
        %v1376 = vadd.f32 %v1168, %v1375
        %v1377 = vpop.f32.mrb[0].mxu0
        %1378 = vdwg.mxu0
        %v1379 = vmax.f32 %v1253, 0.0
        %v1380 = vmax.f32 %v1256, 0.0
        %v1381 = vmax.f32 %v1261, 0.0
        %v1382 = vmax.f32 %v1264, 0.0
        %v1383 = vmax.f32 %v1269, 0.0
        %v1384 = vmax.f32 %v1272, 0.0
        %v1385 = vmax.f32 %v1277, 0.0
        %v1386 = vmax.f32 %v1280, 0.0
        %v1387 = vmax.f32 %v1285, 0.0
        %v1388 = vmax.f32 %v1288, 0.0
        %v1389 = vmax.f32 %v1293, 0.0
        %v1390 = vmax.f32 %v1296, 0.0
        %v1391 = vmax.f32 %v1301, 0.0
        %v1392 = vmax.f32 %v1304, 0.0
        %v1393 = vmax.f32 %v1309, 0.0
        %v1394 = vmax.f32 %v1312, 0.0
        %v1395 = vmax.f32 %v1317, 0.0
        %v1396 = vmax.f32 %v1320, 0.0
        %v1397 = vmax.f32 %v1325, 0.0
        %v1398 = vmax.f32 %v1328, 0.0
        %v1399 = vmax.f32 %v1333, 0.0
        %v1400 = vmax.f32 %v1336, 0.0
        %v1401 = vmax.f32 %v1341, 0.0
        %v1402 = vmax.f32 %v1344, 0.0
        %v1403 = vmax.f32 %v1349, 0.0
        %v1404 = vmax.f32 %v1352, 0.0
        %v1405 = vmax.f32 %v1357, 0.0
        %v1406 = vmax.f32 %v1360, 0.0
        %v1407 = vmax.f32 %v1365, 0.0
        %v1408 = vmax.f32 %v1368, 0.0
        %v1409 = vmax.f32 %v1373, 0.0
        %v1410 = vmax.f32 %v1376, 0.0
        %v1411 = vpack.c.bf16 %v1380, %v1379
        %v1412 = vpack.c.bf16 %v1382, %v1381
        %v1413 = vpack.c.bf16 %v1384, %v1383
        %v1414 = vpack.c.bf16 %v1386, %v1385
        %v1415 = vpack.c.bf16 %v1388, %v1387
        %v1416 = vpack.c.bf16 %v1390, %v1389
        %v1417 = vpack.c.bf16 %v1392, %v1391
        %v1418 = vpack.c.bf16 %v1394, %v1393
        %v1419 = vpack.c.bf16 %v1396, %v1395
        %v1420 = vpack.c.bf16 %v1398, %v1397
        %v1421 = vpack.c.bf16 %v1400, %v1399
        %v1422 = vpack.c.bf16 %v1402, %v1401
        %v1423 = vpack.c.bf16 %v1404, %v1403
        %v1424 = vpack.c.bf16 %v1406, %v1405
        %v1425 = vpack.c.bf16 %v1408, %v1407
        %v1426 = vpack.c.bf16 %v1410, %v1409
        %s1427 = scalar_lea.vmem [#allocation2], 256
        %v1428 = vld [vmem:[%s1427] sm:$0xf]
        %v1429 = vld [vmem:[%s1427 + $0x4] sm:$0xf]
        %v1430 = vld [vmem:[%s1427 + $0x8] sm:$0xf]
        %v1431 = vld [vmem:[%s1427 + $0xc] sm:$0xf]
        %v1432 = vld [vmem:[%s1427 + $0x10] sm:$0xf]
        %v1433 = vld [vmem:[%s1427 + $0x14] sm:$0xf]
        %v1434 = vld [vmem:[%s1427 + $0x18] sm:$0xf]
        %v1435 = vld [vmem:[%s1427 + $0x1c] sm:$0xf]
        %v1436 = vld [vmem:[%s1427 + $0x20] sm:$0xf]
        %v1437 = vld [vmem:[%s1427 + $0x24] sm:$0xf]
        %v1438 = vld [vmem:[%s1427 + $0x28] sm:$0xf]
        %v1439 = vld [vmem:[%s1427 + $0x2c] sm:$0xf]
        %v1440 = vld [vmem:[%s1427 + $0x30] sm:$0xf]
        %v1441 = vld [vmem:[%s1427 + $0x34] sm:$0xf]
        %v1442 = vld [vmem:[%s1427 + $0x38] sm:$0xf]
        %v1443 = vld [vmem:[%s1427 + $0x3c] sm:$0xf]
        %s1444 = scalar_lea.vmem %s2, 4
        %v1445 = vld [vmem:[%s1444] sm:$0x1]
        %v1447 = vlaneseq
        %v1448 = vshrl.u32 %v1447, 7
        %v1449 = vsub.s32 0, %v1448
        %v1450 = vrot.slane %v1445, %v1449
        %v1468 = vunpack.c.l.b16 %v1428
        %v1469 = vunpack.c.l.b16 %v1429
        %v1470 = vunpack.c.l.b16 %v1430
        %v1471 = vunpack.c.l.b16 %v1431
        %v1472 = vunpack.c.l.b16 %v1432
        %v1473 = vunpack.c.l.b16 %v1433
        %v1474 = vunpack.c.l.b16 %v1434
        %v1475 = vunpack.c.l.b16 %v1435
        %v1476 = vunpack.c.l.b16 %v1436
        %v1477 = vunpack.c.l.b16 %v1437
        %v1478 = vunpack.c.l.b16 %v1438
        %v1479 = vunpack.c.l.b16 %v1439
        %v1480 = vunpack.c.l.b16 %v1440
        %v1481 = vunpack.c.l.b16 %v1441
        %v1482 = vunpack.c.l.b16 %v1442
        %v1483 = vunpack.c.l.b16 %v1443
        %v1484 = vpack.c.b16 %v1469, %v1468
        %v1485 = vpack.c.b16 %v1471, %v1470
        %v1486 = vpack.c.b16 %v1473, %v1472
        %v1487 = vpack.c.b16 %v1475, %v1474
        %v1488 = vpack.c.b16 %v1477, %v1476
        %v1489 = vpack.c.b16 %v1479, %v1478
        %v1490 = vpack.c.b16 %v1481, %v1480
        %v1491 = vpack.c.b16 %v1483, %v1482
        %1500 = vmatprep.subr.bf16.mxu0 0
        %1501 = vmatpush1.bf16.msra.mxu0 %v1484
        %1502 = vmatprep.subr.bf16.mxu0 0
        %1503 = vmatpush1.bf16.msra.mxu0 %v1485
        %1504 = vmatprep.subr.bf16.mxu0 0
        %1505 = vmatpush1.bf16.msra.mxu0 %v1486
        %1506 = vmatprep.subr.bf16.mxu0 0
        %1507 = vmatpush1.bf16.msra.mxu0 %v1487
        %1508 = vmatprep.subr.bf16.mxu0 0
        %1509 = vmatpush1.bf16.msra.mxu0 %v1488
        %1510 = vmatprep.subr.bf16.mxu0 0
        %1511 = vmatpush1.bf16.msra.mxu0 %v1489
        %1512 = vmatprep.subr.bf16.mxu0 0
        %1513 = vmatpush1.bf16.msra.mxu0 %v1490
        %1514 = vmatprep.subr.bf16.mxu0 0
        %1515 = vmatpush1.bf16.msra.mxu0 %v1491
        %1516 = vmatprep.subr.bf16.mxu0 0
        %1517 = vmatpush1.bf16.msra.mxu0 0
        %1518 = vmatprep.subr.bf16.mxu0 0
        %1519 = vmatpush1.bf16.msra.mxu0 0
        %1520 = vmatprep.subr.bf16.mxu0 0
        %1521 = vmatpush1.bf16.msra.mxu0 0
        %1522 = vmatprep.subr.bf16.mxu0 0
        %1523 = vmatpush1.bf16.msra.mxu0 0
        %1524 = vmatprep.subr.bf16.mxu0 0
        %1525 = vmatpush1.bf16.msra.mxu0 0
        %1526 = vmatprep.subr.bf16.mxu0 0
        %1527 = vmatpush1.bf16.msra.mxu0 0
        %1528 = vmatprep.subr.bf16.mxu0 0
        %1529 = vmatpush1.bf16.msra.mxu0 0
        %1530 = vmatprep.subr.bf16.mxu0 0
        %1531 = vmatpush1.bf16.msra.mxu0 0
        %1532 = vmatprep.mubr.bf16.mxu0 0
        %1533 = vmatmul.mubr.bf16.gmra.mrb[0].mxu0 %v1411
        %v1534 = vpop.f32.mrb[0].mxu0
        %v1535 = vadd.f32 %v1450, %v1534
        %v1536 = vpop.f32.mrb[0].mxu0
        %v1537 = vpop.f32.mrb[0].mxu0
        %v1538 = vadd.f32 %v1450, %v1537
        %v1539 = vpop.f32.mrb[0].mxu0
        %1540 = vmatprep.mubr.bf16.mxu0 0
        %1541 = vmatmul.mubr.bf16.gmra.mrb[0].mxu0 %v1412
        %v1542 = vpop.f32.mrb[0].mxu0
        %v1543 = vadd.f32 %v1450, %v1542
        %v1544 = vpop.f32.mrb[0].mxu0
        %v1545 = vpop.f32.mrb[0].mxu0
        %v1546 = vadd.f32 %v1450, %v1545
        %v1547 = vpop.f32.mrb[0].mxu0
        %1548 = vmatprep.mubr.bf16.mxu0 0
        %1549 = vmatmul.mubr.bf16.gmra.mrb[0].mxu0 %v1413
        %v1550 = vpop.f32.mrb[0].mxu0
        %v1551 = vadd.f32 %v1450, %v1550
        %v1552 = vpop.f32.mrb[0].mxu0
        %v1553 = vpop.f32.mrb[0].mxu0
        %v1554 = vadd.f32 %v1450, %v1553
        %v1555 = vpop.f32.mrb[0].mxu0
        %1556 = vmatprep.mubr.bf16.mxu0 0
        %1557 = vmatmul.mubr.bf16.gmra.mrb[0].mxu0 %v1414
        %v1558 = vpop.f32.mrb[0].mxu0
        %v1559 = vadd.f32 %v1450, %v1558
        %v1560 = vpop.f32.mrb[0].mxu0
        %v1561 = vpop.f32.mrb[0].mxu0
        %v1562 = vadd.f32 %v1450, %v1561
        %v1563 = vpop.f32.mrb[0].mxu0
        %1564 = vmatprep.mubr.bf16.mxu0 0
        %1565 = vmatmul.mubr.bf16.gmra.mrb[0].mxu0 %v1415
        %v1566 = vpop.f32.mrb[0].mxu0
        %v1567 = vadd.f32 %v1450, %v1566
        %v1568 = vpop.f32.mrb[0].mxu0
        %v1569 = vpop.f32.mrb[0].mxu0
        %v1570 = vadd.f32 %v1450, %v1569
        %v1571 = vpop.f32.mrb[0].mxu0
        %1572 = vmatprep.mubr.bf16.mxu0 0
        %1573 = vmatmul.mubr.bf16.gmra.mrb[0].mxu0 %v1416
        %v1574 = vpop.f32.mrb[0].mxu0
        %v1575 = vadd.f32 %v1450, %v1574
        %v1576 = vpop.f32.mrb[0].mxu0
        %v1577 = vpop.f32.mrb[0].mxu0
        %v1578 = vadd.f32 %v1450, %v1577
        %v1579 = vpop.f32.mrb[0].mxu0
        %1580 = vmatprep.mubr.bf16.mxu0 0
        %1581 = vmatmul.mubr.bf16.gmra.mrb[0].mxu0 %v1417
        %v1582 = vpop.f32.mrb[0].mxu0
        %v1583 = vadd.f32 %v1450, %v1582
        %v1584 = vpop.f32.mrb[0].mxu0
        %v1585 = vpop.f32.mrb[0].mxu0
        %v1586 = vadd.f32 %v1450, %v1585
        %v1587 = vpop.f32.mrb[0].mxu0
        %1588 = vmatprep.mubr.bf16.mxu0 0
        %1589 = vmatmul.mubr.bf16.gmra.mrb[0].mxu0 %v1418
        %v1590 = vpop.f32.mrb[0].mxu0
        %v1591 = vadd.f32 %v1450, %v1590
        %v1592 = vpop.f32.mrb[0].mxu0
        %v1593 = vpop.f32.mrb[0].mxu0
        %v1594 = vadd.f32 %v1450, %v1593
        %v1595 = vpop.f32.mrb[0].mxu0
        %1596 = vmatprep.mubr.bf16.mxu0 0
        %1597 = vmatmul.mubr.bf16.gmra.mrb[0].mxu0 %v1419
        %v1598 = vpop.f32.mrb[0].mxu0
        %v1599 = vadd.f32 %v1450, %v1598
        %v1600 = vpop.f32.mrb[0].mxu0
        %v1601 = vpop.f32.mrb[0].mxu0
        %v1602 = vadd.f32 %v1450, %v1601
        %v1603 = vpop.f32.mrb[0].mxu0
        %1604 = vmatprep.mubr.bf16.mxu0 0
        %1605 = vmatmul.mubr.bf16.gmra.mrb[0].mxu0 %v1420
        %v1606 = vpop.f32.mrb[0].mxu0
        %v1607 = vadd.f32 %v1450, %v1606
        %v1608 = vpop.f32.mrb[0].mxu0
        %v1609 = vpop.f32.mrb[0].mxu0
        %v1610 = vadd.f32 %v1450, %v1609
        %v1611 = vpop.f32.mrb[0].mxu0
        %1612 = vmatprep.mubr.bf16.mxu0 0
        %1613 = vmatmul.mubr.bf16.gmra.mrb[0].mxu0 %v1421
        %v1614 = vpop.f32.mrb[0].mxu0
        %v1615 = vadd.f32 %v1450, %v1614
        %v1616 = vpop.f32.mrb[0].mxu0
        %v1617 = vpop.f32.mrb[0].mxu0
        %v1618 = vadd.f32 %v1450, %v1617
        %v1619 = vpop.f32.mrb[0].mxu0
        %1620 = vmatprep.mubr.bf16.mxu0 0
        %1621 = vmatmul.mubr.bf16.gmra.mrb[0].mxu0 %v1422
        %v1622 = vpop.f32.mrb[0].mxu0
        %v1623 = vadd.f32 %v1450, %v1622
        %v1624 = vpop.f32.mrb[0].mxu0
        %v1625 = vpop.f32.mrb[0].mxu0
        %v1626 = vadd.f32 %v1450, %v1625
        %v1627 = vpop.f32.mrb[0].mxu0
        %1628 = vmatprep.mubr.bf16.mxu0 0
        %1629 = vmatmul.mubr.bf16.gmra.mrb[0].mxu0 %v1423
        %v1630 = vpop.f32.mrb[0].mxu0
        %v1631 = vadd.f32 %v1450, %v1630
        %v1632 = vpop.f32.mrb[0].mxu0
        %v1633 = vpop.f32.mrb[0].mxu0
        %v1634 = vadd.f32 %v1450, %v1633
        %v1635 = vpop.f32.mrb[0].mxu0
        %1636 = vmatprep.mubr.bf16.mxu0 0
        %1637 = vmatmul.mubr.bf16.gmra.mrb[0].mxu0 %v1424
        %v1638 = vpop.f32.mrb[0].mxu0
        %v1639 = vadd.f32 %v1450, %v1638
        %v1640 = vpop.f32.mrb[0].mxu0
        %v1641 = vpop.f32.mrb[0].mxu0
        %v1642 = vadd.f32 %v1450, %v1641
        %v1643 = vpop.f32.mrb[0].mxu0
        %1644 = vmatprep.mubr.bf16.mxu0 0
        %1645 = vmatmul.mubr.bf16.gmra.mrb[0].mxu0 %v1425
        %v1646 = vpop.f32.mrb[0].mxu0
        %v1647 = vadd.f32 %v1450, %v1646
        %v1648 = vpop.f32.mrb[0].mxu0
        %v1649 = vpop.f32.mrb[0].mxu0
        %v1650 = vadd.f32 %v1450, %v1649
        %v1651 = vpop.f32.mrb[0].mxu0
        %1652 = vmatprep.mubr.bf16.mxu0 0
        %1653 = vmatmul.mubr.bf16.gmra.mrb[0].mxu0 %v1426
        %v1654 = vpop.f32.mrb[0].mxu0
        %v1655 = vadd.f32 %v1450, %v1654
        %v1656 = vpop.f32.mrb[0].mxu0
        %v1657 = vpop.f32.mrb[0].mxu0
        %v1658 = vadd.f32 %v1450, %v1657
        %v1659 = vpop.f32.mrb[0].mxu0
        %1660 = vdwg.mxu0
        %v1661 = vmax.f32 %v1535, 0.0
        %v1662 = vmax.f32 %v1538, 0.0
        %v1663 = vmax.f32 %v1543, 0.0
        %v1664 = vmax.f32 %v1546, 0.0
        %v1665 = vmax.f32 %v1551, 0.0
        %v1666 = vmax.f32 %v1554, 0.0
        %v1667 = vmax.f32 %v1559, 0.0
        %v1668 = vmax.f32 %v1562, 0.0
        %v1669 = vmax.f32 %v1567, 0.0
        %v1670 = vmax.f32 %v1570, 0.0
        %v1671 = vmax.f32 %v1575, 0.0
        %v1672 = vmax.f32 %v1578, 0.0
        %v1673 = vmax.f32 %v1583, 0.0
        %v1674 = vmax.f32 %v1586, 0.0
        %v1675 = vmax.f32 %v1591, 0.0
        %v1676 = vmax.f32 %v1594, 0.0
        %v1677 = vmax.f32 %v1599, 0.0
        %v1678 = vmax.f32 %v1602, 0.0
        %v1679 = vmax.f32 %v1607, 0.0
        %v1680 = vmax.f32 %v1610, 0.0
        %v1681 = vmax.f32 %v1615, 0.0
        %v1682 = vmax.f32 %v1618, 0.0
        %v1683 = vmax.f32 %v1623, 0.0
        %v1684 = vmax.f32 %v1626, 0.0
        %v1685 = vmax.f32 %v1631, 0.0
        %v1686 = vmax.f32 %v1634, 0.0
        %v1687 = vmax.f32 %v1639, 0.0
        %v1688 = vmax.f32 %v1642, 0.0
        %v1689 = vmax.f32 %v1647, 0.0
        %v1690 = vmax.f32 %v1650, 0.0
        %v1691 = vmax.f32 %v1655, 0.0
        %v1692 = vmax.f32 %v1658, 0.0
        %v1693 = vpack.c.bf16 %v1662, %v1661
        %v1694 = vpack.c.bf16 %v1664, %v1663
        %v1695 = vpack.c.bf16 %v1666, %v1665
        %v1696 = vpack.c.bf16 %v1668, %v1667
        %v1697 = vpack.c.bf16 %v1670, %v1669
        %v1698 = vpack.c.bf16 %v1672, %v1671
        %v1699 = vpack.c.bf16 %v1674, %v1673
        %v1700 = vpack.c.bf16 %v1676, %v1675
        %v1701 = vpack.c.bf16 %v1678, %v1677
        %v1702 = vpack.c.bf16 %v1680, %v1679
        %v1703 = vpack.c.bf16 %v1682, %v1681
        %v1704 = vpack.c.bf16 %v1684, %v1683
        %v1705 = vpack.c.bf16 %v1686, %v1685
        %v1706 = vpack.c.bf16 %v1688, %v1687
        %v1707 = vpack.c.bf16 %v1690, %v1689
        %v1708 = vpack.c.bf16 %v1692, %v1691
        %s1709 = scalar_lea.vmem [#allocation2], 320
        %v1710 = vld [vmem:[%s1709] sm:$0xf]
        %v1711 = vld [vmem:[%s1709 + $0x4] sm:$0xf]
        %v1712 = vld [vmem:[%s1709 + $0x8] sm:$0xf]
        %v1713 = vld [vmem:[%s1709 + $0xc] sm:$0xf]
        %v1714 = vld [vmem:[%s1709 + $0x10] sm:$0xf]
        %v1715 = vld [vmem:[%s1709 + $0x14] sm:$0xf]
        %v1716 = vld [vmem:[%s1709 + $0x18] sm:$0xf]
        %v1717 = vld [vmem:[%s1709 + $0x1c] sm:$0xf]
        %v1718 = vld [vmem:[%s1709 + $0x20] sm:$0xf]
        %v1719 = vld [vmem:[%s1709 + $0x24] sm:$0xf]
        %v1720 = vld [vmem:[%s1709 + $0x28] sm:$0xf]
        %v1721 = vld [vmem:[%s1709 + $0x2c] sm:$0xf]
        %v1722 = vld [vmem:[%s1709 + $0x30] sm:$0xf]
        %v1723 = vld [vmem:[%s1709 + $0x34] sm:$0xf]
        %v1724 = vld [vmem:[%s1709 + $0x38] sm:$0xf]
        %v1725 = vld [vmem:[%s1709 + $0x3c] sm:$0xf]
        %s1726 = scalar_lea.vmem %s2, 5
        %v1727 = vld [vmem:[%s1726] sm:$0x1]
        %v1729 = vlaneseq
        %v1730 = vshrl.u32 %v1729, 7
        %v1731 = vsub.s32 0, %v1730
        %v1732 = vrot.slane %v1727, %v1731
        %v1750 = vunpack.c.l.b16 %v1710
        %v1751 = vunpack.c.l.b16 %v1711
        %v1752 = vunpack.c.l.b16 %v1712
        %v1753 = vunpack.c.l.b16 %v1713
        %v1754 = vunpack.c.l.b16 %v1714
        %v1755 = vunpack.c.l.b16 %v1715
        %v1756 = vunpack.c.l.b16 %v1716
        %v1757 = vunpack.c.l.b16 %v1717
        %v1758 = vunpack.c.l.b16 %v1718
        %v1759 = vunpack.c.l.b16 %v1719
        %v1760 = vunpack.c.l.b16 %v1720
        %v1761 = vunpack.c.l.b16 %v1721
        %v1762 = vunpack.c.l.b16 %v1722
        %v1763 = vunpack.c.l.b16 %v1723
        %v1764 = vunpack.c.l.b16 %v1724
        %v1765 = vunpack.c.l.b16 %v1725
        %v1766 = vpack.c.b16 %v1751, %v1750
        %v1767 = vpack.c.b16 %v1753, %v1752
        %v1768 = vpack.c.b16 %v1755, %v1754
        %v1769 = vpack.c.b16 %v1757, %v1756
        %v1770 = vpack.c.b16 %v1759, %v1758
        %v1771 = vpack.c.b16 %v1761, %v1760
        %v1772 = vpack.c.b16 %v1763, %v1762
        %v1773 = vpack.c.b16 %v1765, %v1764
        %1782 = vmatprep.subr.bf16.mxu0 0
        %1783 = vmatpush1.bf16.msra.mxu0 %v1766
        %1784 = vmatprep.subr.bf16.mxu0 0
        %1785 = vmatpush1.bf16.msra.mxu0 %v1767
        %1786 = vmatprep.subr.bf16.mxu0 0
        %1787 = vmatpush1.bf16.msra.mxu0 %v1768
        %1788 = vmatprep.subr.bf16.mxu0 0
        %1789 = vmatpush1.bf16.msra.mxu0 %v1769
        %1790 = vmatprep.subr.bf16.mxu0 0
        %1791 = vmatpush1.bf16.msra.mxu0 %v1770
        %1792 = vmatprep.subr.bf16.mxu0 0
        %1793 = vmatpush1.bf16.msra.mxu0 %v1771
        %1794 = vmatprep.subr.bf16.mxu0 0
        %1795 = vmatpush1.bf16.msra.mxu0 %v1772
        %1796 = vmatprep.subr.bf16.mxu0 0
        %1797 = vmatpush1.bf16.msra.mxu0 %v1773
        %1798 = vmatprep.subr.bf16.mxu0 0
        %1799 = vmatpush1.bf16.msra.mxu0 0
        %1800 = vmatprep.subr.bf16.mxu0 0
        %1801 = vmatpush1.bf16.msra.mxu0 0
        %1802 = vmatprep.subr.bf16.mxu0 0
        %1803 = vmatpush1.bf16.msra.mxu0 0
        %1804 = vmatprep.subr.bf16.mxu0 0
        %1805 = vmatpush1.bf16.msra.mxu0 0
        %1806 = vmatprep.subr.bf16.mxu0 0
        %1807 = vmatpush1.bf16.msra.mxu0 0
        %1808 = vmatprep.subr.bf16.mxu0 0
        %1809 = vmatpush1.bf16.msra.mxu0 0
        %1810 = vmatprep.subr.bf16.mxu0 0
        %1811 = vmatpush1.bf16.msra.mxu0 0
        %1812 = vmatprep.subr.bf16.mxu0 0
        %1813 = vmatpush1.bf16.msra.mxu0 0
        %1814 = vmatprep.mubr.bf16.mxu0 0
        %1815 = vmatmul.mubr.bf16.gmra.mrb[0].mxu0 %v1693
        %v1816 = vpop.f32.mrb[0].mxu0
        %v1817 = vadd.f32 %v1732, %v1816
        %v1818 = vpop.f32.mrb[0].mxu0
        %v1819 = vpop.f32.mrb[0].mxu0
        %v1820 = vadd.f32 %v1732, %v1819
        %v1821 = vpop.f32.mrb[0].mxu0
        %1822 = vmatprep.mubr.bf16.mxu0 0
        %1823 = vmatmul.mubr.bf16.gmra.mrb[0].mxu0 %v1694
        %v1824 = vpop.f32.mrb[0].mxu0
        %v1825 = vadd.f32 %v1732, %v1824
        %v1826 = vpop.f32.mrb[0].mxu0
        %v1827 = vpop.f32.mrb[0].mxu0
        %v1828 = vadd.f32 %v1732, %v1827
        %v1829 = vpop.f32.mrb[0].mxu0
        %1830 = vmatprep.mubr.bf16.mxu0 0
        %1831 = vmatmul.mubr.bf16.gmra.mrb[0].mxu0 %v1695
        %v1832 = vpop.f32.mrb[0].mxu0
        %v1833 = vadd.f32 %v1732, %v1832
        %v1834 = vpop.f32.mrb[0].mxu0
        %v1835 = vpop.f32.mrb[0].mxu0
        %v1836 = vadd.f32 %v1732, %v1835
        %v1837 = vpop.f32.mrb[0].mxu0
        %1838 = vmatprep.mubr.bf16.mxu0 0
        %1839 = vmatmul.mubr.bf16.gmra.mrb[0].mxu0 %v1696
        %v1840 = vpop.f32.mrb[0].mxu0
        %v1841 = vadd.f32 %v1732, %v1840
        %v1842 = vpop.f32.mrb[0].mxu0
        %v1843 = vpop.f32.mrb[0].mxu0
        %v1844 = vadd.f32 %v1732, %v1843
        %v1845 = vpop.f32.mrb[0].mxu0
        %1846 = vmatprep.mubr.bf16.mxu0 0
        %1847 = vmatmul.mubr.bf16.gmra.mrb[0].mxu0 %v1697
        %v1848 = vpop.f32.mrb[0].mxu0
        %v1849 = vadd.f32 %v1732, %v1848
        %v1850 = vpop.f32.mrb[0].mxu0
        %v1851 = vpop.f32.mrb[0].mxu0
        %v1852 = vadd.f32 %v1732, %v1851
        %v1853 = vpop.f32.mrb[0].mxu0
        %1854 = vmatprep.mubr.bf16.mxu0 0
        %1855 = vmatmul.mubr.bf16.gmra.mrb[0].mxu0 %v1698
        %v1856 = vpop.f32.mrb[0].mxu0
        %v1857 = vadd.f32 %v1732, %v1856
        %v1858 = vpop.f32.mrb[0].mxu0
        %v1859 = vpop.f32.mrb[0].mxu0
        %v1860 = vadd.f32 %v1732, %v1859
        %v1861 = vpop.f32.mrb[0].mxu0
        %1862 = vmatprep.mubr.bf16.mxu0 0
        %1863 = vmatmul.mubr.bf16.gmra.mrb[0].mxu0 %v1699
        %v1864 = vpop.f32.mrb[0].mxu0
        %v1865 = vadd.f32 %v1732, %v1864
        %v1866 = vpop.f32.mrb[0].mxu0
        %v1867 = vpop.f32.mrb[0].mxu0
        %v1868 = vadd.f32 %v1732, %v1867
        %v1869 = vpop.f32.mrb[0].mxu0
        %1870 = vmatprep.mubr.bf16.mxu0 0
        %1871 = vmatmul.mubr.bf16.gmra.mrb[0].mxu0 %v1700
        %v1872 = vpop.f32.mrb[0].mxu0
        %v1873 = vadd.f32 %v1732, %v1872
        %v1874 = vpop.f32.mrb[0].mxu0
        %v1875 = vpop.f32.mrb[0].mxu0
        %v1876 = vadd.f32 %v1732, %v1875
        %v1877 = vpop.f32.mrb[0].mxu0
        %1878 = vmatprep.mubr.bf16.mxu0 0
        %1879 = vmatmul.mubr.bf16.gmra.mrb[0].mxu0 %v1701
        %v1880 = vpop.f32.mrb[0].mxu0
        %v1881 = vadd.f32 %v1732, %v1880
        %v1882 = vpop.f32.mrb[0].mxu0
        %v1883 = vpop.f32.mrb[0].mxu0
        %v1884 = vadd.f32 %v1732, %v1883
        %v1885 = vpop.f32.mrb[0].mxu0
        %1886 = vmatprep.mubr.bf16.mxu0 0
        %1887 = vmatmul.mubr.bf16.gmra.mrb[0].mxu0 %v1702
        %v1888 = vpop.f32.mrb[0].mxu0
        %v1889 = vadd.f32 %v1732, %v1888
        %v1890 = vpop.f32.mrb[0].mxu0
        %v1891 = vpop.f32.mrb[0].mxu0
        %v1892 = vadd.f32 %v1732, %v1891
        %v1893 = vpop.f32.mrb[0].mxu0
        %1894 = vmatprep.mubr.bf16.mxu0 0
        %1895 = vmatmul.mubr.bf16.gmra.mrb[0].mxu0 %v1703
        %v1896 = vpop.f32.mrb[0].mxu0
        %v1897 = vadd.f32 %v1732, %v1896
        %v1898 = vpop.f32.mrb[0].mxu0
        %v1899 = vpop.f32.mrb[0].mxu0
        %v1900 = vadd.f32 %v1732, %v1899
        %v1901 = vpop.f32.mrb[0].mxu0
        %1902 = vmatprep.mubr.bf16.mxu0 0
        %1903 = vmatmul.mubr.bf16.gmra.mrb[0].mxu0 %v1704
        %v1904 = vpop.f32.mrb[0].mxu0
        %v1905 = vadd.f32 %v1732, %v1904
        %v1906 = vpop.f32.mrb[0].mxu0
        %v1907 = vpop.f32.mrb[0].mxu0
        %v1908 = vadd.f32 %v1732, %v1907
        %v1909 = vpop.f32.mrb[0].mxu0
        %1910 = vmatprep.mubr.bf16.mxu0 0
        %1911 = vmatmul.mubr.bf16.gmra.mrb[0].mxu0 %v1705
        %v1912 = vpop.f32.mrb[0].mxu0
        %v1913 = vadd.f32 %v1732, %v1912
        %v1914 = vpop.f32.mrb[0].mxu0
        %v1915 = vpop.f32.mrb[0].mxu0
        %v1916 = vadd.f32 %v1732, %v1915
        %v1917 = vpop.f32.mrb[0].mxu0
        %1918 = vmatprep.mubr.bf16.mxu0 0
        %1919 = vmatmul.mubr.bf16.gmra.mrb[0].mxu0 %v1706
        %v1920 = vpop.f32.mrb[0].mxu0
        %v1921 = vadd.f32 %v1732, %v1920
        %v1922 = vpop.f32.mrb[0].mxu0
        %v1923 = vpop.f32.mrb[0].mxu0
        %v1924 = vadd.f32 %v1732, %v1923
        %v1925 = vpop.f32.mrb[0].mxu0
        %1926 = vmatprep.mubr.bf16.mxu0 0
        %1927 = vmatmul.mubr.bf16.gmra.mrb[0].mxu0 %v1707
        %v1928 = vpop.f32.mrb[0].mxu0
        %v1929 = vadd.f32 %v1732, %v1928
        %v1930 = vpop.f32.mrb[0].mxu0
        %v1931 = vpop.f32.mrb[0].mxu0
        %v1932 = vadd.f32 %v1732, %v1931
        %v1933 = vpop.f32.mrb[0].mxu0
        %1934 = vmatprep.mubr.bf16.mxu0 0
        %1935 = vmatmul.mubr.bf16.gmra.mrb[0].mxu0 %v1708
        %v1936 = vpop.f32.mrb[0].mxu0
        %v1937 = vadd.f32 %v1732, %v1936
        %v1938 = vpop.f32.mrb[0].mxu0
        %v1939 = vpop.f32.mrb[0].mxu0
        %v1940 = vadd.f32 %v1732, %v1939
        %v1941 = vpop.f32.mrb[0].mxu0
        %1942 = vdwg.mxu0
        %v1943 = vsub.f32 0.0, %v1817
        %v1944 = vsub.f32 0.0, %v1820
        %v1945 = vsub.f32 0.0, %v1825
        %v1946 = vsub.f32 0.0, %v1828
        %v1947 = vsub.f32 0.0, %v1833
        %v1948 = vsub.f32 0.0, %v1836
        %v1949 = vsub.f32 0.0, %v1841
        %v1950 = vsub.f32 0.0, %v1844
        %v1951 = vsub.f32 0.0, %v1849
        %v1952 = vsub.f32 0.0, %v1852
        %v1953 = vsub.f32 0.0, %v1857
        %v1954 = vsub.f32 0.0, %v1860
        %v1955 = vsub.f32 0.0, %v1865
        %v1956 = vsub.f32 0.0, %v1868
        %v1957 = vsub.f32 0.0, %v1873
        %v1958 = vsub.f32 0.0, %v1876
        %v1959 = vsub.f32 0.0, %v1881
        %v1960 = vsub.f32 0.0, %v1884
        %v1961 = vsub.f32 0.0, %v1889
        %v1962 = vsub.f32 0.0, %v1892
        %v1963 = vsub.f32 0.0, %v1897
        %v1964 = vsub.f32 0.0, %v1900
        %v1965 = vsub.f32 0.0, %v1905
        %v1966 = vsub.f32 0.0, %v1908
        %v1967 = vsub.f32 0.0, %v1913
        %v1968 = vsub.f32 0.0, %v1916
        %v1969 = vsub.f32 0.0, %v1921
        %v1970 = vsub.f32 0.0, %v1924
        %v1971 = vsub.f32 0.0, %v1929
        %v1972 = vsub.f32 0.0, %v1932
        %v1973 = vsub.f32 0.0, %v1937
        %v1974 = vsub.f32 0.0, %v1940
        %v1975 = vmul.f32 %v1943, 1.442695
        %v1976 = vpow.pop %v1975
        %v1977 = vmul.f32 %v1944, 1.442695
        %v1978 = vpow.pop %v1977
        %v1979 = vmul.f32 %v1945, 1.442695
        %v1980 = vpow.pop %v1979
        %v1981 = vmul.f32 %v1946, 1.442695
        %v1982 = vpow.pop %v1981
        %v1983 = vmul.f32 %v1947, 1.442695
        %v1984 = vpow.pop %v1983
        %v1985 = vmul.f32 %v1948, 1.442695
        %v1986 = vpow.pop %v1985
        %v1987 = vmul.f32 %v1949, 1.442695
        %v1988 = vpow.pop %v1987
        %v1989 = vmul.f32 %v1950, 1.442695
        %v1990 = vpow.pop %v1989
        %v1991 = vmul.f32 %v1951, 1.442695
        %v1992 = vpow.pop %v1991
        %v1993 = vmul.f32 %v1952, 1.442695
        %v1994 = vpow.pop %v1993
        %v1995 = vmul.f32 %v1953, 1.442695
        %v1996 = vpow.pop %v1995
        %v1997 = vmul.f32 %v1954, 1.442695
        %v1998 = vpow.pop %v1997
        %v1999 = vmul.f32 %v1955, 1.442695
        %v2000 = vpow.pop %v1999
        %v2001 = vmul.f32 %v1956, 1.442695
        %v2002 = vpow.pop %v2001
        %v2003 = vmul.f32 %v1957, 1.442695
        %v2004 = vpow.pop %v2003
        %v2005 = vmul.f32 %v1958, 1.442695
        %v2006 = vpow.pop %v2005
        %v2007 = vmul.f32 %v1959, 1.442695
        %v2008 = vpow.pop %v2007
        %v2009 = vmul.f32 %v1960, 1.442695
        %v2010 = vpow.pop %v2009
        %v2011 = vmul.f32 %v1961, 1.442695
        %v2012 = vpow.pop %v2011
        %v2013 = vmul.f32 %v1962, 1.442695
        %v2014 = vpow.pop %v2013
        %v2015 = vmul.f32 %v1963, 1.442695
        %v2016 = vpow.pop %v2015
        %v2017 = vmul.f32 %v1964, 1.442695
        %v2018 = vpow.pop %v2017
        %v2019 = vmul.f32 %v1965, 1.442695
        %v2020 = vpow.pop %v2019
        %v2021 = vmul.f32 %v1966, 1.442695
        %v2022 = vpow.pop %v2021
        %v2023 = vmul.f32 %v1967, 1.442695
        %v2024 = vpow.pop %v2023
        %v2025 = vmul.f32 %v1968, 1.442695
        %v2026 = vpow.pop %v2025
        %v2027 = vmul.f32 %v1969, 1.442695
        %v2028 = vpow.pop %v2027
        %v2029 = vmul.f32 %v1970, 1.442695
        %v2030 = vpow.pop %v2029
        %v2031 = vmul.f32 %v1971, 1.442695
        %v2032 = vpow.pop %v2031
        %v2033 = vmul.f32 %v1972, 1.442695
        %v2034 = vpow.pop %v2033
        %v2035 = vmul.f32 %v1973, 1.442695
        %v2036 = vpow.pop %v2035
        %v2037 = vmul.f32 %v1974, 1.442695
        %v2038 = vpow.pop %v2037
        %v2039 = vadd.f32 %v1976, 1.0
        %v2040 = vadd.f32 %v1978, 1.0
        %v2041 = vadd.f32 %v1980, 1.0
        %v2042 = vadd.f32 %v1982, 1.0
        %v2043 = vadd.f32 %v1984, 1.0
        %v2044 = vadd.f32 %v1986, 1.0
        %v2045 = vadd.f32 %v1988, 1.0
        %v2046 = vadd.f32 %v1990, 1.0
        %v2047 = vadd.f32 %v1992, 1.0
        %v2048 = vadd.f32 %v1994, 1.0
        %v2049 = vadd.f32 %v1996, 1.0
        %v2050 = vadd.f32 %v1998, 1.0
        %v2051 = vadd.f32 %v2000, 1.0
        %v2052 = vadd.f32 %v2002, 1.0
        %v2053 = vadd.f32 %v2004, 1.0
        %v2054 = vadd.f32 %v2006, 1.0
        %v2055 = vadd.f32 %v2008, 1.0
        %v2056 = vadd.f32 %v2010, 1.0
        %v2057 = vadd.f32 %v2012, 1.0
        %v2058 = vadd.f32 %v2014, 1.0
        %v2059 = vadd.f32 %v2016, 1.0
        %v2060 = vadd.f32 %v2018, 1.0
        %v2061 = vadd.f32 %v2020, 1.0
        %v2062 = vadd.f32 %v2022, 1.0
        %v2063 = vadd.f32 %v2024, 1.0
        %v2064 = vadd.f32 %v2026, 1.0
        %v2065 = vadd.f32 %v2028, 1.0
        %v2066 = vadd.f32 %v2030, 1.0
        %v2067 = vadd.f32 %v2032, 1.0
        %v2068 = vadd.f32 %v2034, 1.0
        %v2069 = vadd.f32 %v2036, 1.0
        %v2070 = vadd.f32 %v2038, 1.0
        %v2071 = vrcp.pop %v2039
        %v2072 = vrcp.pop %v2040
        %v2073 = vrcp.pop %v2041
        %v2074 = vrcp.pop %v2042
        %v2075 = vrcp.pop %v2043
        %v2076 = vrcp.pop %v2044
        %v2077 = vrcp.pop %v2045
        %v2078 = vrcp.pop %v2046
        %v2079 = vrcp.pop %v2047
        %v2080 = vrcp.pop %v2048
        %v2081 = vrcp.pop %v2049
        %v2082 = vrcp.pop %v2050
        %v2083 = vrcp.pop %v2051
        %v2084 = vrcp.pop %v2052
        %v2085 = vrcp.pop %v2053
        %v2086 = vrcp.pop %v2054
        %v2087 = vrcp.pop %v2055
        %v2088 = vrcp.pop %v2056
        %v2089 = vrcp.pop %v2057
        %v2090 = vrcp.pop %v2058
        %v2091 = vrcp.pop %v2059
        %v2092 = vrcp.pop %v2060
        %v2093 = vrcp.pop %v2061
        %v2094 = vrcp.pop %v2062
        %v2095 = vrcp.pop %v2063
        %v2096 = vrcp.pop %v2064
        %v2097 = vrcp.pop %v2065
        %v2098 = vrcp.pop %v2066
        %v2099 = vrcp.pop %v2067
        %v2100 = vrcp.pop %v2068
        %v2101 = vrcp.pop %v2069
        %v2102 = vrcp.pop %v2070
        %2103 = vst [vmem:[%s179] sm:$0xff] %v2071
        %2104 = vst [vmem:[%s179 + $0x8] sm:$0xff] %v2072
        %2105 = vst [vmem:[%s179 + $0x10] sm:$0xff] %v2073
        %2106 = vst [vmem:[%s179 + $0x18] sm:$0xff] %v2074
        %2107 = vst [vmem:[%s179 + $0x20] sm:$0xff] %v2075
        %2108 = vst [vmem:[%s179 + $0x28] sm:$0xff] %v2076
        %2109 = vst [vmem:[%s179 + $0x30] sm:$0xff] %v2077
        %2110 = vst [vmem:[%s179 + $0x38] sm:$0xff] %v2078
        %2111 = vst [vmem:[%s179 + $0x40] sm:$0xff] %v2079
        %2112 = vst [vmem:[%s179 + $0x48] sm:$0xff] %v2080
        %2113 = vst [vmem:[%s179 + $0x50] sm:$0xff] %v2081
        %2114 = vst [vmem:[%s179 + $0x58] sm:$0xff] %v2082
        %2115 = vst [vmem:[%s179 + $0x60] sm:$0xff] %v2083
        %2116 = vst [vmem:[%s179 + $0x68] sm:$0xff] %v2084
        %2117 = vst [vmem:[%s179 + $0x70] sm:$0xff] %v2085
        %2118 = vst [vmem:[%s179 + $0x78] sm:$0xff] %v2086
        %2119 = vst [vmem:[%s179 + $0x80] sm:$0xff] %v2087
        %2120 = vst [vmem:[%s179 + $0x88] sm:$0xff] %v2088
        %2121 = vst [vmem:[%s179 + $0x90] sm:$0xff] %v2089
        %2122 = vst [vmem:[%s179 + $0x98] sm:$0xff] %v2090
        %2123 = vst [vmem:[%s179 + $0xa0] sm:$0xff] %v2091
        %2124 = vst [vmem:[%s179 + $0xa8] sm:$0xff] %v2092
        %2125 = vst [vmem:[%s179 + $0xb0] sm:$0xff] %v2093
        %2126 = vst [vmem:[%s179 + $0xb8] sm:$0xff] %v2094
        %2127 = vst [vmem:[%s179 + $0xc0] sm:$0xff] %v2095
        %2128 = vst [vmem:[%s179 + $0xc8] sm:$0xff] %v2096
        %2129 = vst [vmem:[%s179 + $0xd0] sm:$0xff] %v2097
        %2130 = vst [vmem:[%s179 + $0xd8] sm:$0xff] %v2098
        %2131 = vst [vmem:[%s179 + $0xe0] sm:$0xff] %v2099
        %2132 = vst [vmem:[%s179 + $0xe8] sm:$0xff] %v2100
        %2133 = vst [vmem:[%s179 + $0xf0] sm:$0xff] %v2101
        %2134 = vst [vmem:[%s179 + $0xf8] sm:$0xff] %v2102
        %s2135 = sand.u32 %s94, 1
        %s2136 = scalar_lea.sflag [#allocation4], %s2135
        %s2137 = sand.u32 %s94, 1
        %s2138 = smul.addr %s2137, 256
        %s2139 = scalar_lea.vmem [#allocation5], %s2138
        // Predicated region
        $region37: #{tpu_custom_call.1} parent=31 // pred_check
          %p2140 = pneg %p104
        $region38: #{tpu_custom_call.1} parent=31 // pred_check_branch
          %2142 = sbr.rel (%p2140) target = $region40
        $region39: #{tpu_custom_call.1} parent=31 // pred_region
          %s2143 = smul.u32 32, %s18
          %s2145 = ssub.s32 4096, 4096
          %2146 = vsyncadd %s2136, %s2145
          %s2147 = smul.addr %s2143, 128
          %s2148 = scalar_lea.hbm %s3, %s2147
          %s2149 = sshll.u32 %s2139, 4
          %s2150 = int_to_ptr.vmem [resolvable:$true] %s2149
          %2155 = dma.vmem_to_hbm [thread:$0]  %s2150, 4096, %s2148, %s2136, 128, 128, 8
        $region40: #{tpu_custom_call.1} parent=31 // pred_fallthru
          _
      $region32: #{tpu_custom_call.1} parent=5 // pred_fallthru
        _
      %p2156 = scmp.le.s32.totalorder 2, %s13
      // Predicated region
      $region41: #{tpu_custom_call.1} parent=5 // pred_check
        %p2157 = pneg %p2156
      $region42: #{tpu_custom_call.1} parent=5 // pred_check_branch
        %2159 = sbr.rel (%p2157) target = $region44
      $region43: #{tpu_custom_call.1} parent=5 // pred_region
        %s2160 = ssub.s32 %s13, 2
        // Predicated region
        $region45: #{tpu_custom_call.1} parent=43 // pred_check
          %p2161 = pneg %p110
        $region46: #{tpu_custom_call.1} parent=43 // pred_check_branch
          %2163 = sbr.rel (%p2161) target = $region48
        $region47: #{tpu_custom_call.1} parent=43 // pred_region
          %s2164 = sand.u32 %s95, 1
          %s2165 = scalar_lea.sflag [#allocation4], %s2164
          %s2166 = sand.u32 %s95, 1
          %s2167 = smul.addr %s2166, 256
          %s2168 = scalar_lea.vmem [#allocation5], %s2167
          %2169 = dma.done %s2165, 4096
        $region48: #{tpu_custom_call.1} parent=43 // pred_fallthru
          _
      $region44: #{tpu_custom_call.1} parent=5 // pred_fallthru
        _
    $region6: #{tpu_custom_call.1} parent=1 // loop_footer
      %s17 = sadd.s32 1, %s13
    $region7: #{tpu_custom_call.1} parent=1 // loop_footer_branch
      %12 = sbr.rel target = $region3
    $region8: #{tpu_custom_call.1} parent=1 // loop_exit
      _
    %2170 = vsyncpa [#allocation3], 1
    %s2171 = scalar_lea.sflag [#allocation3], 1
    %2172 = vsyncpa %s2171, 1
    %2173 = vsyncpa [#allocation4], 1
    %s2174 = scalar_lea.sflag [#allocation4], 1
    %2175 = vsyncpa %s2174, 1

</llo_original>
